<compile_context>
chip_gen: v6e
topology: v6e:2x2x1
jax: 0.10.0
libtpu: 0.0.40
codegen_flags: <defaults>
</compile_context>

<pallas_src>
import jax
import jax.numpy as jnp
import numpy as np
from jax.experimental import pallas as pl
from jax.experimental.pallas import tpu as pltpu


# ----------------------------------------------------------------------------
# Config (mirrors the fields the PyTorch module reads)
# ----------------------------------------------------------------------------
class Config:
    image_resize = (4, 4)      # -> input_size = 4*4*3 = 48
    hidden_size = 32           # 4*H = 128 -> packed gates fill exactly one lane tile
    lstm_layers = 2
    num_classes = 5
    dropout = 0.0


def _round_up(v: int, m: int) -> int:
    return (v + m - 1) // m * m


# ----------------------------------------------------------------------------
# Pallas kernel
# ----------------------------------------------------------------------------
def _make_action_net_kernel(num_layers: int, seq_len: int, batch_p: int, hidden: int):
    """Kernel closed over static (num_layers, S, padded batch, hidden)."""
    H = hidden
    G = 4 * H

    def kernel(*refs):
        x_ref = refs[0]                       # (S*BP, DP)   time-major, flattened
        wih0_ref = refs[1]                    # (DP, G)      layer-0 input weights
        whh0_ref = refs[2]                    # (H, G)       layer-0 recurrent weights
        b0_ref = refs[3]                      # (1, G)       layer-0 combined bias
        idx = 4
        wih_refs, whh_refs, b_refs = [], [], []
        for _ in range(1, num_layers):
            wih_refs.append(refs[idx])        # (H, G)
            whh_refs.append(refs[idx + 1])    # (H, G)
            b_refs.append(refs[idx + 2])      # (1, G)
            idx += 3
        wcls_ref = refs[idx]                  # (H, C)
        bcls_ref = refs[idx + 1]              # (1, C)
        out_ref = refs[idx + 2]               # (BP, C)

        S, B = seq_len, batch_p

        # ---- hoisted layer-0 input projection for ALL timesteps (one matmul) ----
        x_proj = (
            jnp.dot(x_ref[...], wih0_ref[...], preferred_element_type=jnp.float32)
            + b0_ref[...]
        )                                                              # (S*B, G)

        whh0 = whh0_ref[...]
        wihs = [r[...] for r in wih_refs]
        whhs = [r[...] for r in whh_refs]
        # pre-broadcast biases once (JAX does not CSE broadcast_in_dim in loops)
        biases = [jnp.broadcast_to(r[...], (B, G)) for r in b_refs]

        zeros_bh = jnp.zeros((B, H), jnp.float32)
        hs = [zeros_bh for _ in range(num_layers)]
        cs = [zeros_bh for _ in range(num_layers)]

        def gate_math(gates, c_prev):
            # gates: (B, 4H) packed [i | f | g | o]; 4H = 128 -> one lane tile.
            # One EUP pass each over the whole packed vreg, then 32-lane static
            # slices (Mosaic emits XLU lane shifts for the f/g/o alignment).
            sg = jax.nn.sigmoid(gates)
            tg = jnp.tanh(gates)
            i_g = sg[:, 0:H]
            f_g = sg[:, H:2 * H]
            g_g = tg[:, 2 * H:3 * H]
            o_g = sg[:, 3 * H:4 * H]
            c = f_g * c_prev + i_g * g_g
            h = o_g * jnp.tanh(c)
            return h, c

        # ---- fully unrolled recurrence (S is small & static) ----
        for t in range(S):
            # layer 0: recurrent matmul only (input part was hoisted)
            g0 = x_proj[t * B:(t + 1) * B, :] + jnp.dot(
                hs[0], whh0, preferred_element_type=jnp.float32)
            hs[0], cs[0] = gate_math(g0, cs[0])
            # layers >= 1: two accumulated dots (no per-step concat copy)
            for l in range(1, num_layers):
                gl = (
                    jnp.dot(hs[l - 1], wihs[l - 1], preferred_element_type=jnp.float32)
                    + jnp.dot(hs[l], whhs[l - 1], preferred_element_type=jnp.float32)
                    + biases[l - 1]
                )
                hs[l], cs[l] = gate_math(gl, cs[l])

        # classifier on last-layer hidden state at the final timestep
        logits = (
            jnp.dot(hs[-1], wcls_ref[...], preferred_element_type=jnp.float32)
            + bcls_ref[...]
        )
        out_ref[...] = logits.astype(out_ref.dtype)

    return kernel


# ----------------------------------------------------------------------------
# Wrapper: padding of inputs + pallas_call
# ----------------------------------------------------------------------------
def action_net_forward(x, params, config: Config):
    """x: (B, S, C, H, W) float32 — same call convention as the PyTorch module."""
    B, S, c, h, w = x.shape
    D = c * h * w
    H = config.hidden_size
    C = config.num_classes
    L = config.lstm_layers
    G = 4 * H

    DP = _round_up(D, 128)          # lane-dense input features (one-time matmul)
    BP = _round_up(B, 8)            # f32 sublane tile; ONLY the batch is padded

    # time-major, flattened frames, zero-padded batch/features: (S*BP, DP)
    x_tm = jnp.transpose(x.reshape(B, S, D), (1, 0, 2)).astype(jnp.float32)
    x_tm = jnp.pad(x_tm, ((0, 0), (0, BP - B), (0, DP - D)))
    x2d = x_tm.reshape(S * BP, DP)

    # layer-0 input weights padded along the (dead) feature rows only
    wih0 = jnp.zeros((DP, G), jnp.float32).at[:D].set(params["wihT0"])

    inputs = [x2d, wih0, params["whhT0"], params["b0"]]
    for l in range(1, L):
        inputs += [params[f"wihT{l}"], params[f"whhT{l}"], params[f"b{l}"]]
    inputs += [params["w_clsT"], params["b_cls"]]

    vmem = pl.BlockSpec(memory_space=pltpu.MemorySpace.VMEM)
    kernel = _make_action_net_kernel(L, S, BP, H)
    out = pl.pallas_call(
        kernel,
        out_shape=jax.ShapeDtypeStruct((BP, C), jnp.float32),
        in_specs=[vmem] * len(inputs),
        out_specs=vmem,
    )(*inputs)
    return out[:B]


# ----------------------------------------------------------------------------
# Deterministic parameter construction (PyTorch-style uniform init)
# ----------------------------------------------------------------------------
def init_params(key, config: Config, input_size: int):
    H = config.hidden_size
    params = {}
    k_lstm = 1.0 / np.sqrt(H)
    for l in range(config.lstm_layers):
        in_dim = input_size if l == 0 else H
        key, k1, k2, k3, k4 = jax.random.split(key, 5)
        w_ih = jax.random.uniform(k1, (4 * H, in_dim), jnp.float32, -k_lstm, k_lstm)
        w_hh = jax.random.uniform(k2, (4 * H, H), jnp.float32, -k_lstm, k_lstm)
        b_ih = jax.random.uniform(k3, (4 * H,), jnp.float32, -k_lstm, k_lstm)
        b_hh = jax.random.uniform(k4, (4 * H,), jnp.float32, -k_lstm, k_lstm)
        params[f"wihT{l}"] = w_ih.T                        # (in_dim, 4H)
        params[f"whhT{l}"] = w_hh.T                        # (H, 4H)
        params[f"b{l}"] = (b_ih + b_hh).reshape(1, 4 * H)  # combined bias
    key, k1, k2 = jax.random.split(key, 3)
    k_cls = 1.0 / np.sqrt(H)
    w_cls = jax.random.uniform(k1, (config.num_classes, H), jnp.float32, -k_cls, k_cls)
    b_cls = jax.random.uniform(k2, (config.num_classes,), jnp.float32, -k_cls, k_cls)
    params["w_clsT"] = w_cls.T                             # (H, num_classes)
    params["b_cls"] = b_cls.reshape(1, config.num_classes)
    return params


# ----------------------------------------------------------------------------
# Pure-JAX reference (same math as torch.nn.LSTM + Linear, eval mode)
# ----------------------------------------------------------------------------
def action_net_reference(x, params, config: Config):
    B, S, c, h, w = x.shape
    D = c * h * w
    xs = x.reshape(B, S, D).astype(jnp.float32)
    H = config.hidden_size
    hs = [jnp.zeros((B, H), jnp.float32) for _ in range(config.lstm_layers)]
    cs = [jnp.zeros((B, H), jnp.float32) for _ in range(config.lstm_layers)]
    for t in range(S):
        inp = xs[:, t, :]
        for l in range(config.lstm_layers):
            gates = inp @ params[f"wihT{l}"] + hs[l] @ params[f"whhT{l}"] + params[f"b{l}"]
            i_g = jax.nn.sigmoid(gates[:, 0:H])
            f_g = jax.nn.sigmoid(gates[:, H:2 * H])
            g_g = jnp.tanh(gates[:, 2 * H:3 * H])
            o_g = jax.nn.sigmoid(gates[:, 3 * H:4 * H])
            cs[l] = f_g * cs[l] + i_g * g_g
            hs[l] = o_g * jnp.tanh(cs[l])
            inp = hs[l]
    return hs[-1] @ params["w_clsT"] + params["b_cls"]


# ----------------------------------------------------------------------------
if __name__ == "__main__":
    cfg = Config()
    B, S = 2, 8
    C, Hh, Ww = 3, cfg.image_resize[0], cfg.image_resize[1]
    input_size = C * Hh * Ww

    key = jax.random.PRNGKey(0)
    key, xk = jax.random.split(key)
    x = jax.random.normal(xk, (B, S, C, Hh, Ww), jnp.float32)

    params = init_params(key, cfg, input_size)

    out = action_net_forward(x, params, cfg)
    out = jax.block_until_ready(out)

    ref = action_net_reference(x, params, cfg)
    np.testing.assert_allclose(np.asarray(out), np.asarray(ref), rtol=1e-3, atol=1e-3)

    print("KERNEL_OK")
</pallas_src>

<mosaic_0001>
module attributes {stable_mosaic.version = 11 : i64} {
  func.func @kernel(%arg0: memref<64x128xf32, #tpu.memory_space<vmem>>, %arg1: memref<128x128xf32, #tpu.memory_space<vmem>>, %arg2: memref<32x128xf32, #tpu.memory_space<vmem>>, %arg3: memref<1x128xf32, #tpu.memory_space<vmem>>, %arg4: memref<32x128xf32, #tpu.memory_space<vmem>>, %arg5: memref<32x128xf32, #tpu.memory_space<vmem>>, %arg6: memref<1x128xf32, #tpu.memory_space<vmem>>, %arg7: memref<32x5xf32, #tpu.memory_space<vmem>>, %arg8: memref<1x5xf32, #tpu.memory_space<vmem>>, %arg9: memref<8x5xf32, #tpu.memory_space<vmem>>) attributes {dimension_semantics = [], scalar_prefetch = 0 : i64, scratch_operands = 0 : i64, tpu.core_type = #tpu.core_type<tc>} {
    %c0 = arith.constant 0 : index
    %c0_0 = arith.constant 0 : index
    %0 = vector.load %arg0[%c0, %c0_0] : memref<64x128xf32, #tpu.memory_space<vmem>>, vector<64x128xf32>
    %c0_1 = arith.constant 0 : index
    %c0_2 = arith.constant 0 : index
    %1 = vector.load %arg1[%c0_1, %c0_2] : memref<128x128xf32, #tpu.memory_space<vmem>>, vector<128x128xf32>
    %cst = arith.constant dense<0.000000e+00> : vector<64x128xf32>
    %2 = tpu.matmul %0, %1, %cst {dimension_numbers = #tpu.dot_dimension_numbers<[1], [0], [0], [1], [0, 0, 1, 1], [], []>} : vector<64x128xf32>, vector<128x128xf32>, vector<64x128xf32> -> vector<64x128xf32>
    %c0_3 = arith.constant 0 : index
    %c0_4 = arith.constant 0 : index
    %3 = vector.load %arg3[%c0_3, %c0_4] : memref<1x128xf32, #tpu.memory_space<vmem>>, vector<1x128xf32>
    %4 = vector.broadcast %3 : vector<1x128xf32> to vector<64x128xf32>
    %5 = arith.addf %2, %4 : vector<64x128xf32>
    %c0_5 = arith.constant 0 : index
    %c0_6 = arith.constant 0 : index
    %6 = vector.load %arg2[%c0_5, %c0_6] : memref<32x128xf32, #tpu.memory_space<vmem>>, vector<32x128xf32>
    %c0_7 = arith.constant 0 : index
    %c0_8 = arith.constant 0 : index
    %7 = vector.load %arg4[%c0_7, %c0_8] : memref<32x128xf32, #tpu.memory_space<vmem>>, vector<32x128xf32>
    %c0_9 = arith.constant 0 : index
    %c0_10 = arith.constant 0 : index
    %8 = vector.load %arg5[%c0_9, %c0_10] : memref<32x128xf32, #tpu.memory_space<vmem>>, vector<32x128xf32>
    %c0_11 = arith.constant 0 : index
    %c0_12 = arith.constant 0 : index
    %9 = vector.load %arg6[%c0_11, %c0_12] : memref<1x128xf32, #tpu.memory_space<vmem>>, vector<1x128xf32>
    %10 = vector.shape_cast %9 : vector<1x128xf32> to vector<1x128xf32>
    %11 = vector.broadcast %10 : vector<1x128xf32> to vector<8x128xf32>
    %cst_13 = arith.constant 0.000000e+00 : f32
    %12 = vector.broadcast %cst_13 : f32 to vector<8x32xf32>
    %13 = vector.extract_strided_slice %5 {offsets = [0, 0], sizes = [8, 128], strides = [1, 1]} : vector<64x128xf32> to vector<8x128xf32>
    %cst_14 = arith.constant dense<0.000000e+00> : vector<8x128xf32>
    %14 = tpu.matmul %12, %6, %cst_14 {dimension_numbers = #tpu.dot_dimension_numbers<[1], [0], [0], [1], [0, 0, 1, 1], [], []>} : vector<8x32xf32>, vector<32x128xf32>, vector<8x128xf32> -> vector<8x128xf32>
    %15 = arith.addf %13, %14 : vector<8x128xf32>
    %16 = arith.negf %15 : vector<8x128xf32>
    %17 = math.exp %16 : vector<8x128xf32>
    %cst_15 = arith.constant 1.000000e+00 : f32
    %18 = vector.broadcast %cst_15 : f32 to vector<8x128xf32>
    %19 = arith.addf %18, %17 : vector<8x128xf32>
    %20 = arith.divf %18, %19 : vector<8x128xf32>
    %21 = math.tanh %15 : vector<8x128xf32>
    %22 = vector.extract_strided_slice %20 {offsets = [0, 0], sizes = [8, 32], strides = [1, 1]} : vector<8x128xf32> to vector<8x32xf32>
    %23 = vector.extract_strided_slice %20 {offsets = [0, 32], sizes = [8, 32], strides = [1, 1]} : vector<8x128xf32> to vector<8x32xf32>
    %24 = vector.extract_strided_slice %21 {offsets = [0, 64], sizes = [8, 32], strides = [1, 1]} : vector<8x128xf32> to vector<8x32xf32>
    %25 = vector.extract_strided_slice %20 {offsets = [0, 96], sizes = [8, 32], strides = [1, 1]} : vector<8x128xf32> to vector<8x32xf32>
    %26 = arith.mulf %23, %12 : vector<8x32xf32>
    %27 = arith.mulf %22, %24 : vector<8x32xf32>
    %28 = arith.addf %26, %27 : vector<8x32xf32>
    %29 = math.tanh %28 : vector<8x32xf32>
    %30 = arith.mulf %25, %29 : vector<8x32xf32>
    %cst_16 = arith.constant dense<0.000000e+00> : vector<8x128xf32>
    %31 = tpu.matmul %30, %7, %cst_16 {dimension_numbers = #tpu.dot_dimension_numbers<[1], [0], [0], [1], [0, 0, 1, 1], [], []>} : vector<8x32xf32>, vector<32x128xf32>, vector<8x128xf32> -> vector<8x128xf32>
    %cst_17 = arith.constant dense<0.000000e+00> : vector<8x128xf32>
    %32 = tpu.matmul %12, %8, %cst_17 {dimension_numbers = #tpu.dot_dimension_numbers<[1], [0], [0], [1], [0, 0, 1, 1], [], []>} : vector<8x32xf32>, vector<32x128xf32>, vector<8x128xf32> -> vector<8x128xf32>
    %33 = arith.addf %31, %32 : vector<8x128xf32>
    %34 = arith.addf %33, %11 : vector<8x128xf32>
    %35 = arith.negf %34 : vector<8x128xf32>
    %36 = math.exp %35 : vector<8x128xf32>
    %cst_18 = arith.constant 1.000000e+00 : f32
    %37 = vector.broadcast %cst_18 : f32 to vector<8x128xf32>
    %38 = arith.addf %37, %36 : vector<8x128xf32>
    %39 = arith.divf %37, %38 : vector<8x128xf32>
    %40 = math.tanh %34 : vector<8x128xf32>
    %41 = vector.extract_strided_slice %39 {offsets = [0, 0], sizes = [8, 32], strides = [1, 1]} : vector<8x128xf32> to vector<8x32xf32>
    %42 = vector.extract_strided_slice %39 {offsets = [0, 32], sizes = [8, 32], strides = [1, 1]} : vector<8x128xf32> to vector<8x32xf32>
    %43 = vector.extract_strided_slice %40 {offsets = [0, 64], sizes = [8, 32], strides = [1, 1]} : vector<8x128xf32> to vector<8x32xf32>
    %44 = vector.extract_strided_slice %39 {offsets = [0, 96], sizes = [8, 32], strides = [1, 1]} : vector<8x128xf32> to vector<8x32xf32>
    %45 = arith.mulf %42, %12 : vector<8x32xf32>
    %46 = arith.mulf %41, %43 : vector<8x32xf32>
    %47 = arith.addf %45, %46 : vector<8x32xf32>
    %48 = math.tanh %47 : vector<8x32xf32>
    %49 = arith.mulf %44, %48 : vector<8x32xf32>
    %50 = vector.extract_strided_slice %5 {offsets = [8, 0], sizes = [8, 128], strides = [1, 1]} : vector<64x128xf32> to vector<8x128xf32>
    %cst_19 = arith.constant dense<0.000000e+00> : vector<8x128xf32>
    %51 = tpu.matmul %30, %6, %cst_19 {dimension_numbers = #tpu.dot_dimension_numbers<[1], [0], [0], [1], [0, 0, 1, 1], [], []>} : vector<8x32xf32>, vector<32x128xf32>, vector<8x128xf32> -> vector<8x128xf32>
    %52 = arith.addf %50, %51 : vector<8x128xf32>
    %53 = arith.negf %52 : vector<8x128xf32>
    %54 = math.exp %53 : vector<8x128xf32>
    %cst_20 = arith.constant 1.000000e+00 : f32
    %55 = vector.broadcast %cst_20 : f32 to vector<8x128xf32>
    %56 = arith.addf %55, %54 : vector<8x128xf32>
    %57 = arith.divf %55, %56 : vector<8x128xf32>
    %58 = math.tanh %52 : vector<8x128xf32>
    %59 = vector.extract_strided_slice %57 {offsets = [0, 0], sizes = [8, 32], strides = [1, 1]} : vector<8x128xf32> to vector<8x32xf32>
    %60 = vector.extract_strided_slice %57 {offsets = [0, 32], sizes = [8, 32], strides = [1, 1]} : vector<8x128xf32> to vector<8x32xf32>
    %61 = vector.extract_strided_slice %58 {offsets = [0, 64], sizes = [8, 32], strides = [1, 1]} : vector<8x128xf32> to vector<8x32xf32>
    %62 = vector.extract_strided_slice %57 {offsets = [0, 96], sizes = [8, 32], strides = [1, 1]} : vector<8x128xf32> to vector<8x32xf32>
    %63 = arith.mulf %60, %28 : vector<8x32xf32>
    %64 = arith.mulf %59, %61 : vector<8x32xf32>
    %65 = arith.addf %63, %64 : vector<8x32xf32>
    %66 = math.tanh %65 : vector<8x32xf32>
    %67 = arith.mulf %62, %66 : vector<8x32xf32>
    %cst_21 = arith.constant dense<0.000000e+00> : vector<8x128xf32>
    %68 = tpu.matmul %67, %7, %cst_21 {dimension_numbers = #tpu.dot_dimension_numbers<[1], [0], [0], [1], [0, 0, 1, 1], [], []>} : vector<8x32xf32>, vector<32x128xf32>, vector<8x128xf32> -> vector<8x128xf32>
    %cst_22 = arith.constant dense<0.000000e+00> : vector<8x128xf32>
    %69 = tpu.matmul %49, %8, %cst_22 {dimension_numbers = #tpu.dot_dimension_numbers<[1], [0], [0], [1], [0, 0, 1, 1], [], []>} : vector<8x32xf32>, vector<32x128xf32>, vector<8x128xf32> -> vector<8x128xf32>
    %70 = arith.addf %68, %69 : vector<8x128xf32>
    %71 = arith.addf %70, %11 : vector<8x128xf32>
    %72 = arith.negf %71 : vector<8x128xf32>
    %73 = math.exp %72 : vector<8x128xf32>
    %cst_23 = arith.constant 1.000000e+00 : f32
    %74 = vector.broadcast %cst_23 : f32 to vector<8x128xf32>
    %75 = arith.addf %74, %73 : vector<8x128xf32>
    %76 = arith.divf %74, %75 : vector<8x128xf32>
    %77 = math.tanh %71 : vector<8x128xf32>
    %78 = vector.extract_strided_slice %76 {offsets = [0, 0], sizes = [8, 32], strides = [1, 1]} : vector<8x128xf32> to vector<8x32xf32>
    %79 = vector.extract_strided_slice %76 {offsets = [0, 32], sizes = [8, 32], strides = [1, 1]} : vector<8x128xf32> to vector<8x32xf32>
    %80 = vector.extract_strided_slice %77 {offsets = [0, 64], sizes = [8, 32], strides = [1, 1]} : vector<8x128xf32> to vector<8x32xf32>
    %81 = vector.extract_strided_slice %76 {offsets = [0, 96], sizes = [8, 32], strides = [1, 1]} : vector<8x128xf32> to vector<8x32xf32>
    %82 = arith.mulf %79, %47 : vector<8x32xf32>
    %83 = arith.mulf %78, %80 : vector<8x32xf32>
    %84 = arith.addf %82, %83 : vector<8x32xf32>
    %85 = math.tanh %84 : vector<8x32xf32>
    %86 = arith.mulf %81, %85 : vector<8x32xf32>
    %87 = vector.extract_strided_slice %5 {offsets = [16, 0], sizes = [8, 128], strides = [1, 1]} : vector<64x128xf32> to vector<8x128xf32>
    %cst_24 = arith.constant dense<0.000000e+00> : vector<8x128xf32>
    %88 = tpu.matmul %67, %6, %cst_24 {dimension_numbers = #tpu.dot_dimension_numbers<[1], [0], [0], [1], [0, 0, 1, 1], [], []>} : vector<8x32xf32>, vector<32x128xf32>, vector<8x128xf32> -> vector<8x128xf32>
    %89 = arith.addf %87, %88 : vector<8x128xf32>
    %90 = arith.negf %89 : vector<8x128xf32>
    %91 = math.exp %90 : vector<8x128xf32>
    %cst_25 = arith.constant 1.000000e+00 : f32
    %92 = vector.broadcast %cst_25 : f32 to vector<8x128xf32>
    %93 = arith.addf %92, %91 : vector<8x128xf32>
    %94 = arith.divf %92, %93 : vector<8x128xf32>
    %95 = math.tanh %89 : vector<8x128xf32>
    %96 = vector.extract_strided_slice %94 {offsets = [0, 0], sizes = [8, 32], strides = [1, 1]} : vector<8x128xf32> to vector<8x32xf32>
    %97 = vector.extract_strided_slice %94 {offsets = [0, 32], sizes = [8, 32], strides = [1, 1]} : vector<8x128xf32> to vector<8x32xf32>
    %98 = vector.extract_strided_slice %95 {offsets = [0, 64], sizes = [8, 32], strides = [1, 1]} : vector<8x128xf32> to vector<8x32xf32>
    %99 = vector.extract_strided_slice %94 {offsets = [0, 96], sizes = [8, 32], strides = [1, 1]} : vector<8x128xf32> to vector<8x32xf32>
    %100 = arith.mulf %97, %65 : vector<8x32xf32>
    %101 = arith.mulf %96, %98 : vector<8x32xf32>
    %102 = arith.addf %100, %101 : vector<8x32xf32>
    %103 = math.tanh %102 : vector<8x32xf32>
    %104 = arith.mulf %99, %103 : vector<8x32xf32>
    %cst_26 = arith.constant dense<0.000000e+00> : vector<8x128xf32>
    %105 = tpu.matmul %104, %7, %cst_26 {dimension_numbers = #tpu.dot_dimension_numbers<[1], [0], [0], [1], [0, 0, 1, 1], [], []>} : vector<8x32xf32>, vector<32x128xf32>, vector<8x128xf32> -> vector<8x128xf32>
    %cst_27 = arith.constant dense<0.000000e+00> : vector<8x128xf32>
    %106 = tpu.matmul %86, %8, %cst_27 {dimension_numbers = #tpu.dot_dimension_numbers<[1], [0], [0], [1], [0, 0, 1, 1], [], []>} : vector<8x32xf32>, vector<32x128xf32>, vector<8x128xf32> -> vector<8x128xf32>
    %107 = arith.addf %105, %106 : vector<8x128xf32>
    %108 = arith.addf %107, %11 : vector<8x128xf32>
    %109 = arith.negf %108 : vector<8x128xf32>
    %110 = math.exp %109 : vector<8x128xf32>
    %cst_28 = arith.constant 1.000000e+00 : f32
    %111 = vector.broadcast %cst_28 : f32 to vector<8x128xf32>
    %112 = arith.addf %111, %110 : vector<8x128xf32>
    %113 = arith.divf %111, %112 : vector<8x128xf32>
    %114 = math.tanh %108 : vector<8x128xf32>
    %115 = vector.extract_strided_slice %113 {offsets = [0, 0], sizes = [8, 32], strides = [1, 1]} : vector<8x128xf32> to vector<8x32xf32>
    %116 = vector.extract_strided_slice %113 {offsets = [0, 32], sizes = [8, 32], strides = [1, 1]} : vector<8x128xf32> to vector<8x32xf32>
    %117 = vector.extract_strided_slice %114 {offsets = [0, 64], sizes = [8, 32], strides = [1, 1]} : vector<8x128xf32> to vector<8x32xf32>
    %118 = vector.extract_strided_slice %113 {offsets = [0, 96], sizes = [8, 32], strides = [1, 1]} : vector<8x128xf32> to vector<8x32xf32>
    %119 = arith.mulf %116, %84 : vector<8x32xf32>
    %120 = arith.mulf %115, %117 : vector<8x32xf32>
    %121 = arith.addf %119, %120 : vector<8x32xf32>
    %122 = math.tanh %121 : vector<8x32xf32>
    %123 = arith.mulf %118, %122 : vector<8x32xf32>
    %124 = vector.extract_strided_slice %5 {offsets = [24, 0], sizes = [8, 128], strides = [1, 1]} : vector<64x128xf32> to vector<8x128xf32>
    %cst_29 = arith.constant dense<0.000000e+00> : vector<8x128xf32>
    %125 = tpu.matmul %104, %6, %cst_29 {dimension_numbers = #tpu.dot_dimension_numbers<[1], [0], [0], [1], [0, 0, 1, 1], [], []>} : vector<8x32xf32>, vector<32x128xf32>, vector<8x128xf32> -> vector<8x128xf32>
    %126 = arith.addf %124, %125 : vector<8x128xf32>
    %127 = arith.negf %126 : vector<8x128xf32>
    %128 = math.exp %127 : vector<8x128xf32>
    %cst_30 = arith.constant 1.000000e+00 : f32
    %129 = vector.broadcast %cst_30 : f32 to vector<8x128xf32>
    %130 = arith.addf %129, %128 : vector<8x128xf32>
    %131 = arith.divf %129, %130 : vector<8x128xf32>
    %132 = math.tanh %126 : vector<8x128xf32>
    %133 = vector.extract_strided_slice %131 {offsets = [0, 0], sizes = [8, 32], strides = [1, 1]} : vector<8x128xf32> to vector<8x32xf32>
    %134 = vector.extract_strided_slice %131 {offsets = [0, 32], sizes = [8, 32], strides = [1, 1]} : vector<8x128xf32> to vector<8x32xf32>
    %135 = vector.extract_strided_slice %132 {offsets = [0, 64], sizes = [8, 32], strides = [1, 1]} : vector<8x128xf32> to vector<8x32xf32>
    %136 = vector.extract_strided_slice %131 {offsets = [0, 96], sizes = [8, 32], strides = [1, 1]} : vector<8x128xf32> to vector<8x32xf32>
    %137 = arith.mulf %134, %102 : vector<8x32xf32>
    %138 = arith.mulf %133, %135 : vector<8x32xf32>
    %139 = arith.addf %137, %138 : vector<8x32xf32>
    %140 = math.tanh %139 : vector<8x32xf32>
    %141 = arith.mulf %136, %140 : vector<8x32xf32>
    %cst_31 = arith.constant dense<0.000000e+00> : vector<8x128xf32>
    %142 = tpu.matmul %141, %7, %cst_31 {dimension_numbers = #tpu.dot_dimension_numbers<[1], [0], [0], [1], [0, 0, 1, 1], [], []>} : vector<8x32xf32>, vector<32x128xf32>, vector<8x128xf32> -> vector<8x128xf32>
    %cst_32 = arith.constant dense<0.000000e+00> : vector<8x128xf32>
    %143 = tpu.matmul %123, %8, %cst_32 {dimension_numbers = #tpu.dot_dimension_numbers<[1], [0], [0], [1], [0, 0, 1, 1], [], []>} : vector<8x32xf32>, vector<32x128xf32>, vector<8x128xf32> -> vector<8x128xf32>
    %144 = arith.addf %142, %143 : vector<8x128xf32>
    %145 = arith.addf %144, %11 : vector<8x128xf32>
    %146 = arith.negf %145 : vector<8x128xf32>
    %147 = math.exp %146 : vector<8x128xf32>
    %cst_33 = arith.constant 1.000000e+00 : f32
    %148 = vector.broadcast %cst_33 : f32 to vector<8x128xf32>
    %149 = arith.addf %148, %147 : vector<8x128xf32>
    %150 = arith.divf %148, %149 : vector<8x128xf32>
    %151 = math.tanh %145 : vector<8x128xf32>
    %152 = vector.extract_strided_slice %150 {offsets = [0, 0], sizes = [8, 32], strides = [1, 1]} : vector<8x128xf32> to vector<8x32xf32>
    %153 = vector.extract_strided_slice %150 {offsets = [0, 32], sizes = [8, 32], strides = [1, 1]} : vector<8x128xf32> to vector<8x32xf32>
    %154 = vector.extract_strided_slice %151 {offsets = [0, 64], sizes = [8, 32], strides = [1, 1]} : vector<8x128xf32> to vector<8x32xf32>
    %155 = vector.extract_strided_slice %150 {offsets = [0, 96], sizes = [8, 32], strides = [1, 1]} : vector<8x128xf32> to vector<8x32xf32>
    %156 = arith.mulf %153, %121 : vector<8x32xf32>
    %157 = arith.mulf %152, %154 : vector<8x32xf32>
    %158 = arith.addf %156, %157 : vector<8x32xf32>
    %159 = math.tanh %158 : vector<8x32xf32>
    %160 = arith.mulf %155, %159 : vector<8x32xf32>
    %161 = vector.extract_strided_slice %5 {offsets = [32, 0], sizes = [8, 128], strides = [1, 1]} : vector<64x128xf32> to vector<8x128xf32>
    %cst_34 = arith.constant dense<0.000000e+00> : vector<8x128xf32>
    %162 = tpu.matmul %141, %6, %cst_34 {dimension_numbers = #tpu.dot_dimension_numbers<[1], [0], [0], [1], [0, 0, 1, 1], [], []>} : vector<8x32xf32>, vector<32x128xf32>, vector<8x128xf32> -> vector<8x128xf32>
    %163 = arith.addf %161, %162 : vector<8x128xf32>
    %164 = arith.negf %163 : vector<8x128xf32>
    %165 = math.exp %164 : vector<8x128xf32>
    %cst_35 = arith.constant 1.000000e+00 : f32
    %166 = vector.broadcast %cst_35 : f32 to vector<8x128xf32>
    %167 = arith.addf %166, %165 : vector<8x128xf32>
    %168 = arith.divf %166, %167 : vector<8x128xf32>
    %169 = math.tanh %163 : vector<8x128xf32>
    %170 = vector.extract_strided_slice %168 {offsets = [0, 0], sizes = [8, 32], strides = [1, 1]} : vector<8x128xf32> to vector<8x32xf32>
    %171 = vector.extract_strided_slice %168 {offsets = [0, 32], sizes = [8, 32], strides = [1, 1]} : vector<8x128xf32> to vector<8x32xf32>
    %172 = vector.extract_strided_slice %169 {offsets = [0, 64], sizes = [8, 32], strides = [1, 1]} : vector<8x128xf32> to vector<8x32xf32>
    %173 = vector.extract_strided_slice %168 {offsets = [0, 96], sizes = [8, 32], strides = [1, 1]} : vector<8x128xf32> to vector<8x32xf32>
    %174 = arith.mulf %171, %139 : vector<8x32xf32>
    %175 = arith.mulf %170, %172 : vector<8x32xf32>
    %176 = arith.addf %174, %175 : vector<8x32xf32>
    %177 = math.tanh %176 : vector<8x32xf32>
    %178 = arith.mulf %173, %177 : vector<8x32xf32>
    %cst_36 = arith.constant dense<0.000000e+00> : vector<8x128xf32>
    %179 = tpu.matmul %178, %7, %cst_36 {dimension_numbers = #tpu.dot_dimension_numbers<[1], [0], [0], [1], [0, 0, 1, 1], [], []>} : vector<8x32xf32>, vector<32x128xf32>, vector<8x128xf32> -> vector<8x128xf32>
    %cst_37 = arith.constant dense<0.000000e+00> : vector<8x128xf32>
    %180 = tpu.matmul %160, %8, %cst_37 {dimension_numbers = #tpu.dot_dimension_numbers<[1], [0], [0], [1], [0, 0, 1, 1], [], []>} : vector<8x32xf32>, vector<32x128xf32>, vector<8x128xf32> -> vector<8x128xf32>
    %181 = arith.addf %179, %180 : vector<8x128xf32>
    %182 = arith.addf %181, %11 : vector<8x128xf32>
    %183 = arith.negf %182 : vector<8x128xf32>
    %184 = math.exp %183 : vector<8x128xf32>
    %cst_38 = arith.constant 1.000000e+00 : f32
    %185 = vector.broadcast %cst_38 : f32 to vector<8x128xf32>
    %186 = arith.addf %185, %184 : vector<8x128xf32>
    %187 = arith.divf %185, %186 : vector<8x128xf32>
    %188 = math.tanh %182 : vector<8x128xf32>
    %189 = vector.extract_strided_slice %187 {offsets = [0, 0], sizes = [8, 32], strides = [1, 1]} : vector<8x128xf32> to vector<8x32xf32>
    %190 = vector.extract_strided_slice %187 {offsets = [0, 32], sizes = [8, 32], strides = [1, 1]} : vector<8x128xf32> to vector<8x32xf32>
    %191 = vector.extract_strided_slice %188 {offsets = [0, 64], sizes = [8, 32], strides = [1, 1]} : vector<8x128xf32> to vector<8x32xf32>
    %192 = vector.extract_strided_slice %187 {offsets = [0, 96], sizes = [8, 32], strides = [1, 1]} : vector<8x128xf32> to vector<8x32xf32>
    %193 = arith.mulf %190, %158 : vector<8x32xf32>
    %194 = arith.mulf %189, %191 : vector<8x32xf32>
    %195 = arith.addf %193, %194 : vector<8x32xf32>
    %196 = math.tanh %195 : vector<8x32xf32>
    %197 = arith.mulf %192, %196 : vector<8x32xf32>
    %198 = vector.extract_strided_slice %5 {offsets = [40, 0], sizes = [8, 128], strides = [1, 1]} : vector<64x128xf32> to vector<8x128xf32>
    %cst_39 = arith.constant dense<0.000000e+00> : vector<8x128xf32>
    %199 = tpu.matmul %178, %6, %cst_39 {dimension_numbers = #tpu.dot_dimension_numbers<[1], [0], [0], [1], [0, 0, 1, 1], [], []>} : vector<8x32xf32>, vector<32x128xf32>, vector<8x128xf32> -> vector<8x128xf32>
    %200 = arith.addf %198, %199 : vector<8x128xf32>
    %201 = arith.negf %200 : vector<8x128xf32>
    %202 = math.exp %201 : vector<8x128xf32>
    %cst_40 = arith.constant 1.000000e+00 : f32
    %203 = vector.broadcast %cst_40 : f32 to vector<8x128xf32>
    %204 = arith.addf %203, %202 : vector<8x128xf32>
    %205 = arith.divf %203, %204 : vector<8x128xf32>
    %206 = math.tanh %200 : vector<8x128xf32>
    %207 = vector.extract_strided_slice %205 {offsets = [0, 0], sizes = [8, 32], strides = [1, 1]} : vector<8x128xf32> to vector<8x32xf32>
    %208 = vector.extract_strided_slice %205 {offsets = [0, 32], sizes = [8, 32], strides = [1, 1]} : vector<8x128xf32> to vector<8x32xf32>
    %209 = vector.extract_strided_slice %206 {offsets = [0, 64], sizes = [8, 32], strides = [1, 1]} : vector<8x128xf32> to vector<8x32xf32>
    %210 = vector.extract_strided_slice %205 {offsets = [0, 96], sizes = [8, 32], strides = [1, 1]} : vector<8x128xf32> to vector<8x32xf32>
    %211 = arith.mulf %208, %176 : vector<8x32xf32>
    %212 = arith.mulf %207, %209 : vector<8x32xf32>
    %213 = arith.addf %211, %212 : vector<8x32xf32>
    %214 = math.tanh %213 : vector<8x32xf32>
    %215 = arith.mulf %210, %214 : vector<8x32xf32>
    %cst_41 = arith.constant dense<0.000000e+00> : vector<8x128xf32>
    %216 = tpu.matmul %215, %7, %cst_41 {dimension_numbers = #tpu.dot_dimension_numbers<[1], [0], [0], [1], [0, 0, 1, 1], [], []>} : vector<8x32xf32>, vector<32x128xf32>, vector<8x128xf32> -> vector<8x128xf32>
    %cst_42 = arith.constant dense<0.000000e+00> : vector<8x128xf32>
    %217 = tpu.matmul %197, %8, %cst_42 {dimension_numbers = #tpu.dot_dimension_numbers<[1], [0], [0], [1], [0, 0, 1, 1], [], []>} : vector<8x32xf32>, vector<32x128xf32>, vector<8x128xf32> -> vector<8x128xf32>
    %218 = arith.addf %216, %217 : vector<8x128xf32>
    %219 = arith.addf %218, %11 : vector<8x128xf32>
    %220 = arith.negf %219 : vector<8x128xf32>
    %221 = math.exp %220 : vector<8x128xf32>
    %cst_43 = arith.constant 1.000000e+00 : f32
    %222 = vector.broadcast %cst_43 : f32 to vector<8x128xf32>
    %223 = arith.addf %222, %221 : vector<8x128xf32>
    %224 = arith.divf %222, %223 : vector<8x128xf32>
    %225 = math.tanh %219 : vector<8x128xf32>
    %226 = vector.extract_strided_slice %224 {offsets = [0, 0], sizes = [8, 32], strides = [1, 1]} : vector<8x128xf32> to vector<8x32xf32>
    %227 = vector.extract_strided_slice %224 {offsets = [0, 32], sizes = [8, 32], strides = [1, 1]} : vector<8x128xf32> to vector<8x32xf32>
    %228 = vector.extract_strided_slice %225 {offsets = [0, 64], sizes = [8, 32], strides = [1, 1]} : vector<8x128xf32> to vector<8x32xf32>
    %229 = vector.extract_strided_slice %224 {offsets = [0, 96], sizes = [8, 32], strides = [1, 1]} : vector<8x128xf32> to vector<8x32xf32>
    %230 = arith.mulf %227, %195 : vector<8x32xf32>
    %231 = arith.mulf %226, %228 : vector<8x32xf32>
    %232 = arith.addf %230, %231 : vector<8x32xf32>
    %233 = math.tanh %232 : vector<8x32xf32>
    %234 = arith.mulf %229, %233 : vector<8x32xf32>
    %235 = vector.extract_strided_slice %5 {offsets = [48, 0], sizes = [8, 128], strides = [1, 1]} : vector<64x128xf32> to vector<8x128xf32>
    %cst_44 = arith.constant dense<0.000000e+00> : vector<8x128xf32>
    %236 = tpu.matmul %215, %6, %cst_44 {dimension_numbers = #tpu.dot_dimension_numbers<[1], [0], [0], [1], [0, 0, 1, 1], [], []>} : vector<8x32xf32>, vector<32x128xf32>, vector<8x128xf32> -> vector<8x128xf32>
    %237 = arith.addf %235, %236 : vector<8x128xf32>
    %238 = arith.negf %237 : vector<8x128xf32>
    %239 = math.exp %238 : vector<8x128xf32>
    %cst_45 = arith.constant 1.000000e+00 : f32
    %240 = vector.broadcast %cst_45 : f32 to vector<8x128xf32>
    %241 = arith.addf %240, %239 : vector<8x128xf32>
    %242 = arith.divf %240, %241 : vector<8x128xf32>
    %243 = math.tanh %237 : vector<8x128xf32>
    %244 = vector.extract_strided_slice %242 {offsets = [0, 0], sizes = [8, 32], strides = [1, 1]} : vector<8x128xf32> to vector<8x32xf32>
    %245 = vector.extract_strided_slice %242 {offsets = [0, 32], sizes = [8, 32], strides = [1, 1]} : vector<8x128xf32> to vector<8x32xf32>
    %246 = vector.extract_strided_slice %243 {offsets = [0, 64], sizes = [8, 32], strides = [1, 1]} : vector<8x128xf32> to vector<8x32xf32>
    %247 = vector.extract_strided_slice %242 {offsets = [0, 96], sizes = [8, 32], strides = [1, 1]} : vector<8x128xf32> to vector<8x32xf32>
    %248 = arith.mulf %245, %213 : vector<8x32xf32>
    %249 = arith.mulf %244, %246 : vector<8x32xf32>
    %250 = arith.addf %248, %249 : vector<8x32xf32>
    %251 = math.tanh %250 : vector<8x32xf32>
    %252 = arith.mulf %247, %251 : vector<8x32xf32>
    %cst_46 = arith.constant dense<0.000000e+00> : vector<8x128xf32>
    %253 = tpu.matmul %252, %7, %cst_46 {dimension_numbers = #tpu.dot_dimension_numbers<[1], [0], [0], [1], [0, 0, 1, 1], [], []>} : vector<8x32xf32>, vector<32x128xf32>, vector<8x128xf32> -> vector<8x128xf32>
    %cst_47 = arith.constant dense<0.000000e+00> : vector<8x128xf32>
    %254 = tpu.matmul %234, %8, %cst_47 {dimension_numbers = #tpu.dot_dimension_numbers<[1], [0], [0], [1], [0, 0, 1, 1], [], []>} : vector<8x32xf32>, vector<32x128xf32>, vector<8x128xf32> -> vector<8x128xf32>
    %255 = arith.addf %253, %254 : vector<8x128xf32>
    %256 = arith.addf %255, %11 : vector<8x128xf32>
    %257 = arith.negf %256 : vector<8x128xf32>
    %258 = math.exp %257 : vector<8x128xf32>
    %cst_48 = arith.constant 1.000000e+00 : f32
    %259 = vector.broadcast %cst_48 : f32 to vector<8x128xf32>
    %260 = arith.addf %259, %258 : vector<8x128xf32>
    %261 = arith.divf %259, %260 : vector<8x128xf32>
    %262 = math.tanh %256 : vector<8x128xf32>
    %263 = vector.extract_strided_slice %261 {offsets = [0, 0], sizes = [8, 32], strides = [1, 1]} : vector<8x128xf32> to vector<8x32xf32>
    %264 = vector.extract_strided_slice %261 {offsets = [0, 32], sizes = [8, 32], strides = [1, 1]} : vector<8x128xf32> to vector<8x32xf32>
    %265 = vector.extract_strided_slice %262 {offsets = [0, 64], sizes = [8, 32], strides = [1, 1]} : vector<8x128xf32> to vector<8x32xf32>
    %266 = vector.extract_strided_slice %261 {offsets = [0, 96], sizes = [8, 32], strides = [1, 1]} : vector<8x128xf32> to vector<8x32xf32>
    %267 = arith.mulf %264, %232 : vector<8x32xf32>
    %268 = arith.mulf %263, %265 : vector<8x32xf32>
    %269 = arith.addf %267, %268 : vector<8x32xf32>
    %270 = math.tanh %269 : vector<8x32xf32>
    %271 = arith.mulf %266, %270 : vector<8x32xf32>
    %272 = vector.extract_strided_slice %5 {offsets = [56, 0], sizes = [8, 128], strides = [1, 1]} : vector<64x128xf32> to vector<8x128xf32>
    %cst_49 = arith.constant dense<0.000000e+00> : vector<8x128xf32>
    %273 = tpu.matmul %252, %6, %cst_49 {dimension_numbers = #tpu.dot_dimension_numbers<[1], [0], [0], [1], [0, 0, 1, 1], [], []>} : vector<8x32xf32>, vector<32x128xf32>, vector<8x128xf32> -> vector<8x128xf32>
    %274 = arith.addf %272, %273 : vector<8x128xf32>
    %275 = arith.negf %274 : vector<8x128xf32>
    %276 = math.exp %275 : vector<8x128xf32>
    %cst_50 = arith.constant 1.000000e+00 : f32
    %277 = vector.broadcast %cst_50 : f32 to vector<8x128xf32>
    %278 = arith.addf %277, %276 : vector<8x128xf32>
    %279 = arith.divf %277, %278 : vector<8x128xf32>
    %280 = math.tanh %274 : vector<8x128xf32>
    %281 = vector.extract_strided_slice %279 {offsets = [0, 0], sizes = [8, 32], strides = [1, 1]} : vector<8x128xf32> to vector<8x32xf32>
    %282 = vector.extract_strided_slice %279 {offsets = [0, 32], sizes = [8, 32], strides = [1, 1]} : vector<8x128xf32> to vector<8x32xf32>
    %283 = vector.extract_strided_slice %280 {offsets = [0, 64], sizes = [8, 32], strides = [1, 1]} : vector<8x128xf32> to vector<8x32xf32>
    %284 = vector.extract_strided_slice %279 {offsets = [0, 96], sizes = [8, 32], strides = [1, 1]} : vector<8x128xf32> to vector<8x32xf32>
    %285 = arith.mulf %282, %250 : vector<8x32xf32>
    %286 = arith.mulf %281, %283 : vector<8x32xf32>
    %287 = arith.addf %285, %286 : vector<8x32xf32>
    %288 = math.tanh %287 : vector<8x32xf32>
    %289 = arith.mulf %284, %288 : vector<8x32xf32>
    %cst_51 = arith.constant dense<0.000000e+00> : vector<8x128xf32>
    %290 = tpu.matmul %289, %7, %cst_51 {dimension_numbers = #tpu.dot_dimension_numbers<[1], [0], [0], [1], [0, 0, 1, 1], [], []>} : vector<8x32xf32>, vector<32x128xf32>, vector<8x128xf32> -> vector<8x128xf32>
    %cst_52 = arith.constant dense<0.000000e+00> : vector<8x128xf32>
    %291 = tpu.matmul %271, %8, %cst_52 {dimension_numbers = #tpu.dot_dimension_numbers<[1], [0], [0], [1], [0, 0, 1, 1], [], []>} : vector<8x32xf32>, vector<32x128xf32>, vector<8x128xf32> -> vector<8x128xf32>
    %292 = arith.addf %290, %291 : vector<8x128xf32>
    %293 = arith.addf %292, %11 : vector<8x128xf32>
    %294 = arith.negf %293 : vector<8x128xf32>
    %295 = math.exp %294 : vector<8x128xf32>
    %cst_53 = arith.constant 1.000000e+00 : f32
    %296 = vector.broadcast %cst_53 : f32 to vector<8x128xf32>
    %297 = arith.addf %296, %295 : vector<8x128xf32>
    %298 = arith.divf %296, %297 : vector<8x128xf32>
    %299 = math.tanh %293 : vector<8x128xf32>
    %300 = vector.extract_strided_slice %298 {offsets = [0, 0], sizes = [8, 32], strides = [1, 1]} : vector<8x128xf32> to vector<8x32xf32>
    %301 = vector.extract_strided_slice %298 {offsets = [0, 32], sizes = [8, 32], strides = [1, 1]} : vector<8x128xf32> to vector<8x32xf32>
    %302 = vector.extract_strided_slice %299 {offsets = [0, 64], sizes = [8, 32], strides = [1, 1]} : vector<8x128xf32> to vector<8x32xf32>
    %303 = vector.extract_strided_slice %298 {offsets = [0, 96], sizes = [8, 32], strides = [1, 1]} : vector<8x128xf32> to vector<8x32xf32>
    %304 = arith.mulf %301, %269 : vector<8x32xf32>
    %305 = arith.mulf %300, %302 : vector<8x32xf32>
    %306 = arith.addf %304, %305 : vector<8x32xf32>
    %307 = math.tanh %306 : vector<8x32xf32>
    %308 = arith.mulf %303, %307 : vector<8x32xf32>
    %c0_54 = arith.constant 0 : index
    %c0_55 = arith.constant 0 : index
    %309 = vector.load %arg7[%c0_54, %c0_55] : memref<32x5xf32, #tpu.memory_space<vmem>>, vector<32x5xf32>
    %cst_56 = arith.constant dense<0.000000e+00> : vector<8x5xf32>
    %310 = tpu.matmul %308, %309, %cst_56 {dimension_numbers = #tpu.dot_dimension_numbers<[1], [0], [0], [1], [0, 0, 1, 1], [], []>} : vector<8x32xf32>, vector<32x5xf32>, vector<8x5xf32> -> vector<8x5xf32>
    %c0_57 = arith.constant 0 : index
    %c0_58 = arith.constant 0 : index
    %311 = vector.load %arg8[%c0_57, %c0_58] : memref<1x5xf32, #tpu.memory_space<vmem>>, vector<1x5xf32>
    %312 = vector.broadcast %311 : vector<1x5xf32> to vector<8x5xf32>
    %313 = arith.addf %310, %312 : vector<8x5xf32>
    %c0_59 = arith.constant 0 : index
    %c0_60 = arith.constant 0 : index
    %314 = vector.load %arg9[%c0_59, %c0_60] : memref<8x5xf32, #tpu.memory_space<vmem>>, vector<8x5xf32>
    tpu.vector_store %arg9[%c0_59, %c0_60], %313 {strides = array<i32>} : memref<8x5xf32, #tpu.memory_space<vmem>>, vector<8x5xf32>,
    return
  }
}

</mosaic_0001>

<llo_original>
// kernel: tpu_custom_call.1
$region0: #{tpu_custom_call.1}
  #allocation0 [shape = 'u32[]', space=smem, size = 0x4, offset = 0x4, fixed_abs, tag = 'smem constant byte address 0x4 - core index']
  #allocation1 [shape = 'u32[144,128]{1,0:T(1,128)}', space=vmem, size = 0x12000, scoped, tag = 'internal scratch']
  %s0 = inlined_call_operand.hbm [shape: f32[64,128], index: 0, kind: input, shape index: {}]
  %s1 = inlined_call_operand.hbm [shape: f32[128,128], index: 1, kind: input, shape index: {}]
  %s2 = inlined_call_operand.vmem [shape: f32[32,128], index: 2, kind: input, shape index: {}]
  %s3 = inlined_call_operand.vmem [shape: f32[1,128], index: 3, kind: input, shape index: {}]
  %s4 = inlined_call_operand.hbm [shape: f32[32,128], index: 4, kind: input, shape index: {}]
  %s5 = inlined_call_operand.hbm [shape: f32[32,128], index: 5, kind: input, shape index: {}]
  %s6 = inlined_call_operand.vmem [shape: f32[1,128], index: 6, kind: input, shape index: {}]
  %s7 = inlined_call_operand.vmem [shape: f32[32,5], index: 7, kind: input, shape index: {}]
  %s8 = inlined_call_operand.vmem [shape: f32[1,5], index: 8, kind: input, shape index: {}]
  %s9 = inlined_call_operand.hbm [shape: f32[8,5], index: 9, kind: output, shape index: {}]
  %s10 = sld [smem:[#allocation0]]
  $region62: #{tpu_custom_call.1} parent=0
    _
  %s12 = ssub.s32 1, %s10
  %s13 = scalar_select 0, %s12, %s10
  $region1: #{tpu_custom_call.1} parent=0
    #allocation2 [shape = 'u8[32768]{0}', space=vmem, size = 0x8000, scoped, tag = 'input window, operand 0, single buffered']
    #allocation3 [shape = 's32[1]{0}', space=sflag, size = 0x4, scoped, tag = 'scoped memory for tpu_custom_call.1']
    #allocation4 [shape = 's32[1]{0}', space=sflag, size = 0x4, scoped, tag = 'scoped memory for tpu_custom_call.1']
    #allocation5 [shape = 'u8[65536]{0}', space=vmem, size = 0x10000, scoped, tag = 'input window, operand 1, single buffered']
    #allocation6 [shape = 's32[1]{0}', space=sflag, size = 0x4, scoped, tag = 'scoped memory for tpu_custom_call.1']
    #allocation7 [shape = 'u8[16384]{0}', space=vmem, size = 0x4000, scoped, tag = 'input window, operand 4, single buffered']
    #allocation8 [shape = 'u8[16384]{0}', space=vmem, size = 0x4000, scoped, tag = 'input window, operand 5, single buffered']
    #allocation9 [shape = 's32[1]{0}', space=sflag, size = 0x4, scoped, tag = 'scoped memory for tpu_custom_call.1']
    #allocation10 [shape = 'u8[4096]{0}', space=vmem, size = 0x1000, scoped, tag = 'output window, operand 0, single buffered']
    %14 = vsyncpa [#allocation3], 0
    %15 = vsyncpa [#allocation6], 0
    %16 = vsyncpa [#allocation9], 0
    %17 = vsyncpa [#allocation4], 0
    // Predicated region
    $region2: #{tpu_custom_call.1} parent=1 // pred_check
      _
    $region3: #{tpu_custom_call.1} parent=1 // pred_check_branch
      %19 = sbr.rel (0) target = $region5
    $region4: #{tpu_custom_call.1} parent=1 // pred_region
      %s21 = ssub.s32 1024, 1024
      %22 = vsyncadd [#allocation3], %s21
      %s23 = sshll.u32 [#allocation2], 4
      %s24 = int_to_ptr.vmem [resolvable:$true] %s23
      %29 = dma.hbm_to_vmem [thread:$0]  %s0, 1024, %s24, [#allocation3], 128, 128, 8
    $region5: #{tpu_custom_call.1} parent=1 // pred_fallthru
      _
    // Predicated region
    $region6: #{tpu_custom_call.1} parent=1 // pred_check
      _
    $region7: #{tpu_custom_call.1} parent=1 // pred_check_branch
      %31 = sbr.rel (0) target = $region9
    $region8: #{tpu_custom_call.1} parent=1 // pred_region
      %s33 = ssub.s32 2048, 2048
      %34 = vsyncadd [#allocation6], %s33
      %s35 = sshll.u32 [#allocation5], 4
      %s36 = int_to_ptr.vmem [resolvable:$true] %s35
      %41 = dma.hbm_to_vmem [thread:$0]  %s1, 2048, %s36, [#allocation6], 128, 128, 8
    $region9: #{tpu_custom_call.1} parent=1 // pred_fallthru
      _
    // Predicated region
    $region10: #{tpu_custom_call.1} parent=1 // pred_check
      _
    $region11: #{tpu_custom_call.1} parent=1 // pred_check_branch
      %43 = sbr.rel (0) target = $region13
    $region12: #{tpu_custom_call.1} parent=1 // pred_region
      _
    $region13: #{tpu_custom_call.1} parent=1 // pred_fallthru
      _
    // Predicated region
    $region14: #{tpu_custom_call.1} parent=1 // pred_check
      _
    $region15: #{tpu_custom_call.1} parent=1 // pred_check_branch
      %45 = sbr.rel (0) target = $region17
    $region16: #{tpu_custom_call.1} parent=1 // pred_region
      _
    $region17: #{tpu_custom_call.1} parent=1 // pred_fallthru
      _
    // Predicated region
    $region18: #{tpu_custom_call.1} parent=1 // pred_check
      _
    $region19: #{tpu_custom_call.1} parent=1 // pred_check_branch
      %47 = sbr.rel (0) target = $region21
    $region20: #{tpu_custom_call.1} parent=1 // pred_region
      %s49 = ssub.s32 512, 512
      %50 = vsyncadd [#allocation6], %s49
      %s51 = sshll.u32 [#allocation7], 4
      %s52 = int_to_ptr.vmem [resolvable:$true] %s51
      %57 = dma.hbm_to_vmem [thread:$0]  %s4, 512, %s52, [#allocation6], 128, 128, 8
    $region21: #{tpu_custom_call.1} parent=1 // pred_fallthru
      _
    // Predicated region
    $region22: #{tpu_custom_call.1} parent=1 // pred_check
      _
    $region23: #{tpu_custom_call.1} parent=1 // pred_check_branch
      %59 = sbr.rel (0) target = $region25
    $region24: #{tpu_custom_call.1} parent=1 // pred_region
      %s61 = ssub.s32 512, 512
      %62 = vsyncadd [#allocation9], %s61
      %s63 = sshll.u32 [#allocation8], 4
      %s64 = int_to_ptr.vmem [resolvable:$true] %s63
      %69 = dma.hbm_to_vmem [thread:$0]  %s5, 512, %s64, [#allocation9], 128, 128, 8
    $region25: #{tpu_custom_call.1} parent=1 // pred_fallthru
      _
    // Predicated region
    $region26: #{tpu_custom_call.1} parent=1 // pred_check
      _
    $region27: #{tpu_custom_call.1} parent=1 // pred_check_branch
      %71 = sbr.rel (0) target = $region29
    $region28: #{tpu_custom_call.1} parent=1 // pred_region
      _
    $region29: #{tpu_custom_call.1} parent=1 // pred_fallthru
      _
    // Predicated region
    $region30: #{tpu_custom_call.1} parent=1 // pred_check
      _
    $region31: #{tpu_custom_call.1} parent=1 // pred_check_branch
      %73 = sbr.rel (0) target = $region33
    $region32: #{tpu_custom_call.1} parent=1 // pred_region
      _
    $region33: #{tpu_custom_call.1} parent=1 // pred_fallthru
      _
    // Predicated region
    $region34: #{tpu_custom_call.1} parent=1 // pred_check
      _
    $region35: #{tpu_custom_call.1} parent=1 // pred_check_branch
      %75 = sbr.rel (0) target = $region37
    $region36: #{tpu_custom_call.1} parent=1 // pred_region
      _
    $region37: #{tpu_custom_call.1} parent=1 // pred_fallthru
      _
    // Predicated region
    $region38: #{tpu_custom_call.1} parent=1 // pred_check
      _
    $region39: #{tpu_custom_call.1} parent=1 // pred_check_branch
      %77 = sbr.rel (0) target = $region41
    $region40: #{tpu_custom_call.1} parent=1 // pred_region
      %78 = dma.done [#allocation3], 1024
    $region41: #{tpu_custom_call.1} parent=1 // pred_fallthru
      _
    // Predicated region
    $region42: #{tpu_custom_call.1} parent=1 // pred_check
      _
    $region43: #{tpu_custom_call.1} parent=1 // pred_check_branch
      %80 = sbr.rel (0) target = $region45
    $region44: #{tpu_custom_call.1} parent=1 // pred_region
      %81 = dma.done [#allocation6], 2048
    $region45: #{tpu_custom_call.1} parent=1 // pred_fallthru
      _
    // Predicated region
    $region46: #{tpu_custom_call.1} parent=1 // pred_check
      _
    $region47: #{tpu_custom_call.1} parent=1 // pred_check_branch
      %83 = sbr.rel (0) target = $region49
    $region48: #{tpu_custom_call.1} parent=1 // pred_region
      %84 = dma.done [#allocation6], 512
    $region49: #{tpu_custom_call.1} parent=1 // pred_fallthru
      _
    // Predicated region
    $region50: #{tpu_custom_call.1} parent=1 // pred_check
      _
    $region51: #{tpu_custom_call.1} parent=1 // pred_check_branch
      %86 = sbr.rel (0) target = $region53
    $region52: #{tpu_custom_call.1} parent=1 // pred_region
      %87 = dma.done [#allocation9], 512
    $region53: #{tpu_custom_call.1} parent=1 // pred_fallthru
      _
    %v88 = vld [vmem:[#allocation2] sm:$0xff]
    %v89 = vld [vmem:[#allocation2 + $0x8] sm:$0xff]
    %v90 = vld [vmem:[#allocation2 + $0x10] sm:$0xff]
    %v91 = vld [vmem:[#allocation2 + $0x18] sm:$0xff]
    %v92 = vld [vmem:[#allocation2 + $0x20] sm:$0xff]
    %v93 = vld [vmem:[#allocation2 + $0x28] sm:$0xff]
    %v94 = vld [vmem:[#allocation2 + $0x30] sm:$0xff]
    %v95 = vld [vmem:[#allocation2 + $0x38] sm:$0xff]
    %v96 = vld [vmem:[#allocation5] sm:$0xff]
    %v97 = vld [vmem:[#allocation5 + $0x8] sm:$0xff]
    %v98 = vld [vmem:[#allocation5 + $0x10] sm:$0xff]
    %v99 = vld [vmem:[#allocation5 + $0x18] sm:$0xff]
    %v100 = vld [vmem:[#allocation5 + $0x20] sm:$0xff]
    %v101 = vld [vmem:[#allocation5 + $0x28] sm:$0xff]
    %v102 = vld [vmem:[#allocation5 + $0x30] sm:$0xff]
    %v103 = vld [vmem:[#allocation5 + $0x38] sm:$0xff]
    %v104 = vld [vmem:[#allocation5 + $0x40] sm:$0xff]
    %v105 = vld [vmem:[#allocation5 + $0x48] sm:$0xff]
    %v106 = vld [vmem:[#allocation5 + $0x50] sm:$0xff]
    %v107 = vld [vmem:[#allocation5 + $0x58] sm:$0xff]
    %v108 = vld [vmem:[#allocation5 + $0x60] sm:$0xff]
    %v109 = vld [vmem:[#allocation5 + $0x68] sm:$0xff]
    %v110 = vld [vmem:[#allocation5 + $0x70] sm:$0xff]
    %v111 = vld [vmem:[#allocation5 + $0x78] sm:$0xff]
    %v112 = vld [vmem:[%s3] sm:$0x1]
    %v114 = vlaneseq
    %v115 = vshrl.u32 %v114, 7
    %v116 = vsub.s32 0, %v115
    %v117 = vrot.slane %v112, %v116
    %119 = vmatprep.subr.mxu0 0.0
    %120 = vmatpush1.msra.mxu0 %v111
    %121 = vmatprep.subr.mxu0 0.0
    %122 = vmatpush1.msra.mxu0 %v110
    %123 = vmatprep.subr.mxu0 0.0
    %124 = vmatpush1.msra.mxu0 %v109
    %125 = vmatprep.subr.mxu0 0.0
    %126 = vmatpush1.msra.mxu0 %v108
    %127 = vmatprep.subr.mxu0 0.0
    %128 = vmatpush1.msra.mxu0 %v107
    %129 = vmatprep.subr.mxu0 0.0
    %130 = vmatpush1.msra.mxu0 %v106
    %131 = vmatprep.subr.mxu0 0.0
    %132 = vmatpush1.msra.mxu0 %v105
    %133 = vmatprep.subr.mxu0 0.0
    %134 = vmatpush1.msra.mxu0 %v104
    %135 = vmatprep.subr.mxu0 0.0
    %136 = vmatpush1.msra.mxu0 %v103
    %137 = vmatprep.subr.mxu0 0.0
    %138 = vmatpush1.msra.mxu0 %v102
    %139 = vmatprep.subr.mxu0 0.0
    %140 = vmatpush1.msra.mxu0 %v101
    %141 = vmatprep.subr.mxu0 0.0
    %142 = vmatpush1.msra.mxu0 %v100
    %143 = vmatprep.subr.mxu0 0.0
    %144 = vmatpush1.msra.mxu0 %v99
    %145 = vmatprep.subr.mxu0 0.0
    %146 = vmatpush1.msra.mxu0 %v98
    %147 = vmatprep.subr.mxu0 0.0
    %148 = vmatpush1.msra.mxu0 %v97
    %149 = vmatprep.subr.mxu0 0.0
    %150 = vmatpush1.msra.mxu0 %v96
    %151 = vmatprep.subr.mxu0 0.0
    %152 = vmatpush2.msra.mxu0 0.0
    %153 = vmatprep.subr.mxu0 0.0
    %154 = vmatpush2.msra.mxu0 0.0
    %155 = vmatprep.subr.mxu0 0.0
    %156 = vmatpush2.msra.mxu0 0.0
    %157 = vmatprep.subr.mxu0 0.0
    %158 = vmatpush2.msra.mxu0 0.0
    %159 = vmatprep.subr.mxu0 0.0
    %160 = vmatpush2.msra.mxu0 0.0
    %161 = vmatprep.subr.mxu0 0.0
    %162 = vmatpush2.msra.mxu0 0.0
    %163 = vmatprep.subr.mxu0 0.0
    %164 = vmatpush2.msra.mxu0 0.0
    %165 = vmatprep.subr.mxu0 0.0
    %166 = vmatpush2.msra.mxu0 0.0
    %167 = vmatprep.subr.mxu0 0.0
    %168 = vmatpush2.msra.mxu0 0.0
    %169 = vmatprep.subr.mxu0 0.0
    %170 = vmatpush2.msra.mxu0 0.0
    %171 = vmatprep.subr.mxu0 0.0
    %172 = vmatpush2.msra.mxu0 0.0
    %173 = vmatprep.subr.mxu0 0.0
    %174 = vmatpush2.msra.mxu0 0.0
    %175 = vmatprep.subr.mxu0 0.0
    %176 = vmatpush2.msra.mxu0 0.0
    %177 = vmatprep.subr.mxu0 0.0
    %178 = vmatpush2.msra.mxu0 0.0
    %179 = vmatprep.subr.mxu0 0.0
    %180 = vmatpush2.msra.mxu0 0.0
    %181 = vmatprep.subr.mxu0 0.0
    %182 = vmatpush2.msra.mxu0 0.0
    %183 = vmatprep.mubr.f32.mxu0 0.0
    %184 = vmatmul.mubr.f32.gmra.mxu0 %v88
    %v185 = vpop.f32.mrf.mxu0
    %v186 = vadd.f32 %v117, %v185
    %v187 = vpop.f32.mrf.mxu0
    %188 = vmatprep.mubr.f32.mxu0 0.0
    %189 = vmatmul.mubr.f32.gmra.mxu0 %v89
    %v190 = vpop.f32.mrf.mxu0
    %v191 = vadd.f32 %v117, %v190
    %v192 = vpop.f32.mrf.mxu0
    %193 = vmatprep.mubr.f32.mxu0 0.0
    %194 = vmatmul.mubr.f32.gmra.mxu0 %v90
    %v195 = vpop.f32.mrf.mxu0
    %v196 = vadd.f32 %v117, %v195
    %v197 = vpop.f32.mrf.mxu0
    %198 = vmatprep.mubr.f32.mxu0 0.0
    %199 = vmatmul.mubr.f32.gmra.mxu0 %v91
    %v200 = vpop.f32.mrf.mxu0
    %v201 = vadd.f32 %v117, %v200
    %v202 = vpop.f32.mrf.mxu0
    %203 = vmatprep.mubr.f32.mxu0 0.0
    %204 = vmatmul.mubr.f32.gmra.mxu0 %v92
    %v205 = vpop.f32.mrf.mxu0
    %v206 = vadd.f32 %v117, %v205
    %v207 = vpop.f32.mrf.mxu0
    %208 = vmatprep.mubr.f32.mxu0 0.0
    %209 = vmatmul.mubr.f32.gmra.mxu0 %v93
    %v210 = vpop.f32.mrf.mxu0
    %v211 = vadd.f32 %v117, %v210
    %v212 = vpop.f32.mrf.mxu0
    %213 = vmatprep.mubr.f32.mxu0 0.0
    %214 = vmatmul.mubr.f32.gmra.mxu0 %v94
    %v215 = vpop.f32.mrf.mxu0
    %v216 = vadd.f32 %v117, %v215
    %v217 = vpop.f32.mrf.mxu0
    %218 = vmatprep.mubr.f32.mxu0 0.0
    %219 = vmatmul.mubr.f32.gmra.mxu0 %v95
    %v220 = vpop.f32.mrf.mxu0
    %v221 = vadd.f32 %v117, %v220
    %v222 = vpop.f32.mrf.mxu0
    %223 = vdwg.mxu0
    %v224 = vld [vmem:[%s2] sm:$0xff]
    %v225 = vld [vmem:[%s2 + $0x8] sm:$0xff]
    %v226 = vld [vmem:[%s2 + $0x10] sm:$0xff]
    %v227 = vld [vmem:[%s2 + $0x18] sm:$0xff]
    %v228 = vld [vmem:[#allocation7] sm:$0xff]
    %v229 = vld [vmem:[#allocation7 + $0x8] sm:$0xff]
    %v230 = vld [vmem:[#allocation7 + $0x10] sm:$0xff]
    %v231 = vld [vmem:[#allocation7 + $0x18] sm:$0xff]
    %v232 = vld [vmem:[#allocation8] sm:$0xff]
    %v233 = vld [vmem:[#allocation8 + $0x8] sm:$0xff]
    %v234 = vld [vmem:[#allocation8 + $0x10] sm:$0xff]
    %v235 = vld [vmem:[#allocation8 + $0x18] sm:$0xff]
    %v236 = vld [vmem:[%s6] sm:$0x1]
    %v238 = vlaneseq
    %v239 = vshrl.u32 %v238, 7
    %v240 = vsub.s32 0, %v239
    %v241 = vrot.slane %v236, %v240
    %vm243 = vcmask 261120
    %v245 = vsel %vm243, 0.0, 0
    %247 = vmatprep.subr.mxu0 0.0
    %248 = vmatpush1.msra.mxu0 0.0
    %249 = vmatprep.subr.mxu0 0.0
    %250 = vmatpush1.msra.mxu0 0.0
    %251 = vmatprep.subr.mxu0 0.0
    %252 = vmatpush1.msra.mxu0 0.0
    %253 = vmatprep.subr.mxu0 0.0
    %254 = vmatpush1.msra.mxu0 0.0
    %255 = vmatprep.subr.mxu0 0.0
    %256 = vmatpush1.msra.mxu0 0.0
    %257 = vmatprep.subr.mxu0 0.0
    %258 = vmatpush1.msra.mxu0 0.0
    %259 = vmatprep.subr.mxu0 0.0
    %260 = vmatpush1.msra.mxu0 0.0
    %261 = vmatprep.subr.mxu0 0.0
    %262 = vmatpush1.msra.mxu0 0.0
    %263 = vmatprep.subr.mxu0 0.0
    %264 = vmatpush1.msra.mxu0 0.0
    %265 = vmatprep.subr.mxu0 0.0
    %266 = vmatpush1.msra.mxu0 0.0
    %267 = vmatprep.subr.mxu0 0.0
    %268 = vmatpush1.msra.mxu0 0.0
    %269 = vmatprep.subr.mxu0 0.0
    %270 = vmatpush1.msra.mxu0 0.0
    %271 = vmatprep.subr.mxu0 0.0
    %272 = vmatpush1.msra.mxu0 %v227
    %273 = vmatprep.subr.mxu0 0.0
    %274 = vmatpush1.msra.mxu0 %v226
    %275 = vmatprep.subr.mxu0 0.0
    %276 = vmatpush1.msra.mxu0 %v225
    %277 = vmatprep.subr.mxu0 0.0
    %278 = vmatpush1.msra.mxu0 %v224
    %279 = vmatprep.subr.mxu0 0.0
    %280 = vmatpush2.msra.mxu0 0.0
    %281 = vmatprep.subr.mxu0 0.0
    %282 = vmatpush2.msra.mxu0 0.0
    %283 = vmatprep.subr.mxu0 0.0
    %284 = vmatpush2.msra.mxu0 0.0
    %285 = vmatprep.subr.mxu0 0.0
    %286 = vmatpush2.msra.mxu0 0.0
    %287 = vmatprep.subr.mxu0 0.0
    %288 = vmatpush2.msra.mxu0 0.0
    %289 = vmatprep.subr.mxu0 0.0
    %290 = vmatpush2.msra.mxu0 0.0
    %291 = vmatprep.subr.mxu0 0.0
    %292 = vmatpush2.msra.mxu0 0.0
    %293 = vmatprep.subr.mxu0 0.0
    %294 = vmatpush2.msra.mxu0 0.0
    %295 = vmatprep.subr.mxu0 0.0
    %296 = vmatpush2.msra.mxu0 0.0
    %297 = vmatprep.subr.mxu0 0.0
    %298 = vmatpush2.msra.mxu0 0.0
    %299 = vmatprep.subr.mxu0 0.0
    %300 = vmatpush2.msra.mxu0 0.0
    %301 = vmatprep.subr.mxu0 0.0
    %302 = vmatpush2.msra.mxu0 0.0
    %303 = vmatprep.subr.mxu0 0.0
    %304 = vmatpush2.msra.mxu0 0.0
    %305 = vmatprep.subr.mxu0 0.0
    %306 = vmatpush2.msra.mxu0 0.0
    %307 = vmatprep.subr.mxu0 0.0
    %308 = vmatpush2.msra.mxu0 0.0
    %309 = vmatprep.subr.mxu0 0.0
    %310 = vmatpush2.msra.mxu0 0.0
    %311 = vmatprep.mubr.f32.mxu0 0.0
    %312 = vmatmul.mubr.f32.gmra.mxu0 %v245
    %v313 = vpop.f32.mrf.mxu0
    %v314 = vadd.f32 0.0, %v313
    %v315 = vpop.f32.mrf.mxu0
    %316 = vdwg.mxu0
    %v317 = vadd.f32 %v186, %v314
    %v318 = vxor.u32 %v317, 2147483648
    %v319 = vmul.f32 %v318, 1.442695
    %v320 = vpow.pop %v319
    %v321 = vadd.f32 %v320, 1.0
    %v322 = vrcp.pop %v321
    %v323 = vmul.f32 1.0, %v322
    %v324 = vtanh.pop %v317
    %v325 = vmul.f32 %v323, 0.0
    %327 = vrot.lane.b32.xlu0 %v324, 64
    %v328 = vpop.permute.xlu0 %327
    %v330 = vmul.f32 %v323, %v328
    %332 = vrot.lane.b32.xlu0 %v330, 32
    %v333 = vpop.permute.xlu0 %332
    %v335 = vadd.f32 %v325, %v333
    %v336 = vtanh.pop %v335
    %338 = vrot.lane.b32.xlu0 %v336, 64
    %v339 = vpop.permute.xlu0 %338
    %v341 = vmul.f32 %v323, %v339
    %342 = vmatprep.subr.mxu0 0.0
    %343 = vmatpush1.msra.mxu0 0.0
    %344 = vmatprep.subr.mxu0 0.0
    %345 = vmatpush1.msra.mxu0 0.0
    %346 = vmatprep.subr.mxu0 0.0
    %347 = vmatpush1.msra.mxu0 0.0
    %348 = vmatprep.subr.mxu0 0.0
    %349 = vmatpush1.msra.mxu0 0.0
    %350 = vmatprep.subr.mxu0 0.0
    %351 = vmatpush1.msra.mxu0 0.0
    %352 = vmatprep.subr.mxu0 0.0
    %353 = vmatpush1.msra.mxu0 0.0
    %354 = vmatprep.subr.mxu0 0.0
    %355 = vmatpush1.msra.mxu0 0.0
    %356 = vmatprep.subr.mxu0 0.0
    %357 = vmatpush1.msra.mxu0 0.0
    %358 = vmatprep.subr.mxu0 0.0
    %359 = vmatpush1.msra.mxu0 0.0
    %360 = vmatprep.subr.mxu0 0.0
    %361 = vmatpush1.msra.mxu0 0.0
    %362 = vmatprep.subr.mxu0 0.0
    %363 = vmatpush1.msra.mxu0 0.0
    %364 = vmatprep.subr.mxu0 0.0
    %365 = vmatpush1.msra.mxu0 0.0
    %366 = vmatprep.subr.mxu0 0.0
    %367 = vmatpush1.msra.mxu0 %v235
    %368 = vmatprep.subr.mxu0 0.0
    %369 = vmatpush1.msra.mxu0 %v234
    %370 = vmatprep.subr.mxu0 0.0
    %371 = vmatpush1.msra.mxu0 %v233
    %372 = vmatprep.subr.mxu0 0.0
    %373 = vmatpush1.msra.mxu0 %v232
    %374 = vmatprep.subr.mxu0 0.0
    %375 = vmatpush2.msra.mxu0 0.0
    %376 = vmatprep.subr.mxu0 0.0
    %377 = vmatpush2.msra.mxu0 0.0
    %378 = vmatprep.subr.mxu0 0.0
    %379 = vmatpush2.msra.mxu0 0.0
    %380 = vmatprep.subr.mxu0 0.0
    %381 = vmatpush2.msra.mxu0 0.0
    %382 = vmatprep.subr.mxu0 0.0
    %383 = vmatpush2.msra.mxu0 0.0
    %384 = vmatprep.subr.mxu0 0.0
    %385 = vmatpush2.msra.mxu0 0.0
    %386 = vmatprep.subr.mxu0 0.0
    %387 = vmatpush2.msra.mxu0 0.0
    %388 = vmatprep.subr.mxu0 0.0
    %389 = vmatpush2.msra.mxu0 0.0
    %390 = vmatprep.subr.mxu0 0.0
    %391 = vmatpush2.msra.mxu0 0.0
    %392 = vmatprep.subr.mxu0 0.0
    %393 = vmatpush2.msra.mxu0 0.0
    %394 = vmatprep.subr.mxu0 0.0
    %395 = vmatpush2.msra.mxu0 0.0
    %396 = vmatprep.subr.mxu0 0.0
    %397 = vmatpush2.msra.mxu0 0.0
    %398 = vmatprep.subr.mxu0 0.0
    %399 = vmatpush2.msra.mxu0 0.0
    %400 = vmatprep.subr.mxu0 0.0
    %401 = vmatpush2.msra.mxu0 0.0
    %402 = vmatprep.subr.mxu0 0.0
    %403 = vmatpush2.msra.mxu0 0.0
    %404 = vmatprep.subr.mxu0 0.0
    %405 = vmatpush2.msra.mxu0 0.0
    %406 = vmatprep.mubr.f32.mxu0 0.0
    %407 = vmatmul.mubr.f32.gmra.mxu0 %v245
    %v408 = vpop.f32.mrf.mxu0
    %v409 = vadd.f32 0.0, %v408
    %v410 = vpop.f32.mrf.mxu0
    %411 = vdwg.mxu0
    %413 = vrot.lane.b32.xlu0 %v341, 32
    %v414 = vpop.permute.xlu0 %413
    %v415 = vsel %vm243, %v414, 0
    %417 = vmatprep.subr.mxu0 0.0
    %418 = vmatpush1.msra.mxu0 0.0
    %419 = vmatprep.subr.mxu0 0.0
    %420 = vmatpush1.msra.mxu0 0.0
    %421 = vmatprep.subr.mxu0 0.0
    %422 = vmatpush1.msra.mxu0 0.0
    %423 = vmatprep.subr.mxu0 0.0
    %424 = vmatpush1.msra.mxu0 0.0
    %425 = vmatprep.subr.mxu0 0.0
    %426 = vmatpush1.msra.mxu0 0.0
    %427 = vmatprep.subr.mxu0 0.0
    %428 = vmatpush1.msra.mxu0 0.0
    %429 = vmatprep.subr.mxu0 0.0
    %430 = vmatpush1.msra.mxu0 0.0
    %431 = vmatprep.subr.mxu0 0.0
    %432 = vmatpush1.msra.mxu0 0.0
    %433 = vmatprep.subr.mxu0 0.0
    %434 = vmatpush1.msra.mxu0 0.0
    %435 = vmatprep.subr.mxu0 0.0
    %436 = vmatpush1.msra.mxu0 0.0
    %437 = vmatprep.subr.mxu0 0.0
    %438 = vmatpush1.msra.mxu0 0.0
    %439 = vmatprep.subr.mxu0 0.0
    %440 = vmatpush1.msra.mxu0 0.0
    %441 = vmatprep.subr.mxu0 0.0
    %442 = vmatpush1.msra.mxu0 %v231
    %443 = vmatprep.subr.mxu0 0.0
    %444 = vmatpush1.msra.mxu0 %v230
    %445 = vmatprep.subr.mxu0 0.0
    %446 = vmatpush1.msra.mxu0 %v229
    %447 = vmatprep.subr.mxu0 0.0
    %448 = vmatpush1.msra.mxu0 %v228
    %449 = vmatprep.subr.mxu0 0.0
    %450 = vmatpush2.msra.mxu0 0.0
    %451 = vmatprep.subr.mxu0 0.0
    %452 = vmatpush2.msra.mxu0 0.0
    %453 = vmatprep.subr.mxu0 0.0
    %454 = vmatpush2.msra.mxu0 0.0
    %455 = vmatprep.subr.mxu0 0.0
    %456 = vmatpush2.msra.mxu0 0.0
    %457 = vmatprep.subr.mxu0 0.0
    %458 = vmatpush2.msra.mxu0 0.0
    %459 = vmatprep.subr.mxu0 0.0
    %460 = vmatpush2.msra.mxu0 0.0
    %461 = vmatprep.subr.mxu0 0.0
    %462 = vmatpush2.msra.mxu0 0.0
    %463 = vmatprep.subr.mxu0 0.0
    %464 = vmatpush2.msra.mxu0 0.0
    %465 = vmatprep.subr.mxu0 0.0
    %466 = vmatpush2.msra.mxu0 0.0
    %467 = vmatprep.subr.mxu0 0.0
    %468 = vmatpush2.msra.mxu0 0.0
    %469 = vmatprep.subr.mxu0 0.0
    %470 = vmatpush2.msra.mxu0 0.0
    %471 = vmatprep.subr.mxu0 0.0
    %472 = vmatpush2.msra.mxu0 0.0
    %473 = vmatprep.subr.mxu0 0.0
    %474 = vmatpush2.msra.mxu0 0.0
    %475 = vmatprep.subr.mxu0 0.0
    %476 = vmatpush2.msra.mxu0 0.0
    %477 = vmatprep.subr.mxu0 0.0
    %478 = vmatpush2.msra.mxu0 0.0
    %479 = vmatprep.subr.mxu0 0.0
    %480 = vmatpush2.msra.mxu0 0.0
    %481 = vmatprep.mubr.f32.mxu0 0.0
    %482 = vmatmul.mubr.f32.gmra.mxu0 %v415
    %v483 = vpop.f32.mrf.mxu0
    %v484 = vadd.f32 %v409, %v483
    %v485 = vpop.f32.mrf.mxu0
    %486 = vdwg.mxu0
    %v487 = vadd.f32 %v484, %v241
    %v488 = vxor.u32 %v487, 2147483648
    %v489 = vmul.f32 %v488, 1.442695
    %v490 = vpow.pop %v489
    %v491 = vadd.f32 %v490, 1.0
    %v492 = vrcp.pop %v491
    %v493 = vmul.f32 1.0, %v492
    %v494 = vtanh.pop %v487
    %v495 = vmul.f32 %v493, 0.0
    %497 = vrot.lane.b32.xlu0 %v494, 64
    %v498 = vpop.permute.xlu0 %497
    %v500 = vmul.f32 %v493, %v498
    %502 = vrot.lane.b32.xlu0 %v500, 32
    %v503 = vpop.permute.xlu0 %502
    %v505 = vadd.f32 %v495, %v503
    %v506 = vtanh.pop %v505
    %508 = vrot.lane.b32.xlu0 %v506, 64
    %v509 = vpop.permute.xlu0 %508
    %v511 = vmul.f32 %v493, %v509
    %512 = vmatprep.subr.mxu0 0.0
    %513 = vmatpush1.msra.mxu0 0.0
    %514 = vmatprep.subr.mxu0 0.0
    %515 = vmatpush1.msra.mxu0 0.0
    %516 = vmatprep.subr.mxu0 0.0
    %517 = vmatpush1.msra.mxu0 0.0
    %518 = vmatprep.subr.mxu0 0.0
    %519 = vmatpush1.msra.mxu0 0.0
    %520 = vmatprep.subr.mxu0 0.0
    %521 = vmatpush1.msra.mxu0 0.0
    %522 = vmatprep.subr.mxu0 0.0
    %523 = vmatpush1.msra.mxu0 0.0
    %524 = vmatprep.subr.mxu0 0.0
    %525 = vmatpush1.msra.mxu0 0.0
    %526 = vmatprep.subr.mxu0 0.0
    %527 = vmatpush1.msra.mxu0 0.0
    %528 = vmatprep.subr.mxu0 0.0
    %529 = vmatpush1.msra.mxu0 0.0
    %530 = vmatprep.subr.mxu0 0.0
    %531 = vmatpush1.msra.mxu0 0.0
    %532 = vmatprep.subr.mxu0 0.0
    %533 = vmatpush1.msra.mxu0 0.0
    %534 = vmatprep.subr.mxu0 0.0
    %535 = vmatpush1.msra.mxu0 0.0
    %536 = vmatprep.subr.mxu0 0.0
    %537 = vmatpush1.msra.mxu0 %v227
    %538 = vmatprep.subr.mxu0 0.0
    %539 = vmatpush1.msra.mxu0 %v226
    %540 = vmatprep.subr.mxu0 0.0
    %541 = vmatpush1.msra.mxu0 %v225
    %542 = vmatprep.subr.mxu0 0.0
    %543 = vmatpush1.msra.mxu0 %v224
    %544 = vmatprep.subr.mxu0 0.0
    %545 = vmatpush2.msra.mxu0 0.0
    %546 = vmatprep.subr.mxu0 0.0
    %547 = vmatpush2.msra.mxu0 0.0
    %548 = vmatprep.subr.mxu0 0.0
    %549 = vmatpush2.msra.mxu0 0.0
    %550 = vmatprep.subr.mxu0 0.0
    %551 = vmatpush2.msra.mxu0 0.0
    %552 = vmatprep.subr.mxu0 0.0
    %553 = vmatpush2.msra.mxu0 0.0
    %554 = vmatprep.subr.mxu0 0.0
    %555 = vmatpush2.msra.mxu0 0.0
    %556 = vmatprep.subr.mxu0 0.0
    %557 = vmatpush2.msra.mxu0 0.0
    %558 = vmatprep.subr.mxu0 0.0
    %559 = vmatpush2.msra.mxu0 0.0
    %560 = vmatprep.subr.mxu0 0.0
    %561 = vmatpush2.msra.mxu0 0.0
    %562 = vmatprep.subr.mxu0 0.0
    %563 = vmatpush2.msra.mxu0 0.0
    %564 = vmatprep.subr.mxu0 0.0
    %565 = vmatpush2.msra.mxu0 0.0
    %566 = vmatprep.subr.mxu0 0.0
    %567 = vmatpush2.msra.mxu0 0.0
    %568 = vmatprep.subr.mxu0 0.0
    %569 = vmatpush2.msra.mxu0 0.0
    %570 = vmatprep.subr.mxu0 0.0
    %571 = vmatpush2.msra.mxu0 0.0
    %572 = vmatprep.subr.mxu0 0.0
    %573 = vmatpush2.msra.mxu0 0.0
    %574 = vmatprep.subr.mxu0 0.0
    %575 = vmatpush2.msra.mxu0 0.0
    %576 = vmatprep.mubr.f32.mxu0 0.0
    %577 = vmatmul.mubr.f32.gmra.mxu0 %v415
    %v578 = vpop.f32.mrf.mxu0
    %v579 = vadd.f32 0.0, %v578
    %v580 = vpop.f32.mrf.mxu0
    %581 = vdwg.mxu0
    %v582 = vadd.f32 %v191, %v579
    %v583 = vxor.u32 %v582, 2147483648
    %v584 = vmul.f32 %v583, 1.442695
    %v585 = vpow.pop %v584
    %v586 = vadd.f32 %v585, 1.0
    %v587 = vrcp.pop %v586
    %v588 = vmul.f32 1.0, %v587
    %v589 = vtanh.pop %v582
    %v590 = vmul.f32 %v588, %v335
    %592 = vrot.lane.b32.xlu0 %v589, 64
    %v593 = vpop.permute.xlu0 %592
    %v595 = vmul.f32 %v588, %v593
    %597 = vrot.lane.b32.xlu0 %v595, 32
    %v598 = vpop.permute.xlu0 %597
    %v600 = vadd.f32 %v590, %v598
    %v601 = vtanh.pop %v600
    %603 = vrot.lane.b32.xlu0 %v601, 64
    %v604 = vpop.permute.xlu0 %603
    %v606 = vmul.f32 %v588, %v604
    %608 = vrot.lane.b32.xlu0 %v511, 32
    %v609 = vpop.permute.xlu0 %608
    %v610 = vsel %vm243, %v609, 0
    %612 = vmatprep.subr.mxu0 0.0
    %613 = vmatpush1.msra.mxu0 0.0
    %614 = vmatprep.subr.mxu0 0.0
    %615 = vmatpush1.msra.mxu0 0.0
    %616 = vmatprep.subr.mxu0 0.0
    %617 = vmatpush1.msra.mxu0 0.0
    %618 = vmatprep.subr.mxu0 0.0
    %619 = vmatpush1.msra.mxu0 0.0
    %620 = vmatprep.subr.mxu0 0.0
    %621 = vmatpush1.msra.mxu0 0.0
    %622 = vmatprep.subr.mxu0 0.0
    %623 = vmatpush1.msra.mxu0 0.0
    %624 = vmatprep.subr.mxu0 0.0
    %625 = vmatpush1.msra.mxu0 0.0
    %626 = vmatprep.subr.mxu0 0.0
    %627 = vmatpush1.msra.mxu0 0.0
    %628 = vmatprep.subr.mxu0 0.0
    %629 = vmatpush1.msra.mxu0 0.0
    %630 = vmatprep.subr.mxu0 0.0
    %631 = vmatpush1.msra.mxu0 0.0
    %632 = vmatprep.subr.mxu0 0.0
    %633 = vmatpush1.msra.mxu0 0.0
    %634 = vmatprep.subr.mxu0 0.0
    %635 = vmatpush1.msra.mxu0 0.0
    %636 = vmatprep.subr.mxu0 0.0
    %637 = vmatpush1.msra.mxu0 %v235
    %638 = vmatprep.subr.mxu0 0.0
    %639 = vmatpush1.msra.mxu0 %v234
    %640 = vmatprep.subr.mxu0 0.0
    %641 = vmatpush1.msra.mxu0 %v233
    %642 = vmatprep.subr.mxu0 0.0
    %643 = vmatpush1.msra.mxu0 %v232
    %644 = vmatprep.subr.mxu0 0.0
    %645 = vmatpush2.msra.mxu0 0.0
    %646 = vmatprep.subr.mxu0 0.0
    %647 = vmatpush2.msra.mxu0 0.0
    %648 = vmatprep.subr.mxu0 0.0
    %649 = vmatpush2.msra.mxu0 0.0
    %650 = vmatprep.subr.mxu0 0.0
    %651 = vmatpush2.msra.mxu0 0.0
    %652 = vmatprep.subr.mxu0 0.0
    %653 = vmatpush2.msra.mxu0 0.0
    %654 = vmatprep.subr.mxu0 0.0
    %655 = vmatpush2.msra.mxu0 0.0
    %656 = vmatprep.subr.mxu0 0.0
    %657 = vmatpush2.msra.mxu0 0.0
    %658 = vmatprep.subr.mxu0 0.0
    %659 = vmatpush2.msra.mxu0 0.0
    %660 = vmatprep.subr.mxu0 0.0
    %661 = vmatpush2.msra.mxu0 0.0
    %662 = vmatprep.subr.mxu0 0.0
    %663 = vmatpush2.msra.mxu0 0.0
    %664 = vmatprep.subr.mxu0 0.0
    %665 = vmatpush2.msra.mxu0 0.0
    %666 = vmatprep.subr.mxu0 0.0
    %667 = vmatpush2.msra.mxu0 0.0
    %668 = vmatprep.subr.mxu0 0.0
    %669 = vmatpush2.msra.mxu0 0.0
    %670 = vmatprep.subr.mxu0 0.0
    %671 = vmatpush2.msra.mxu0 0.0
    %672 = vmatprep.subr.mxu0 0.0
    %673 = vmatpush2.msra.mxu0 0.0
    %674 = vmatprep.subr.mxu0 0.0
    %675 = vmatpush2.msra.mxu0 0.0
    %676 = vmatprep.mubr.f32.mxu0 0.0
    %677 = vmatmul.mubr.f32.gmra.mxu0 %v610
    %v678 = vpop.f32.mrf.mxu0
    %v679 = vadd.f32 0.0, %v678
    %v680 = vpop.f32.mrf.mxu0
    %681 = vdwg.mxu0
    %683 = vrot.lane.b32.xlu0 %v606, 32
    %v684 = vpop.permute.xlu0 %683
    %v685 = vsel %vm243, %v684, 0
    %687 = vmatprep.subr.mxu0 0.0
    %688 = vmatpush1.msra.mxu0 0.0
    %689 = vmatprep.subr.mxu0 0.0
    %690 = vmatpush1.msra.mxu0 0.0
    %691 = vmatprep.subr.mxu0 0.0
    %692 = vmatpush1.msra.mxu0 0.0
    %693 = vmatprep.subr.mxu0 0.0
    %694 = vmatpush1.msra.mxu0 0.0
    %695 = vmatprep.subr.mxu0 0.0
    %696 = vmatpush1.msra.mxu0 0.0
    %697 = vmatprep.subr.mxu0 0.0
    %698 = vmatpush1.msra.mxu0 0.0
    %699 = vmatprep.subr.mxu0 0.0
    %700 = vmatpush1.msra.mxu0 0.0
    %701 = vmatprep.subr.mxu0 0.0
    %702 = vmatpush1.msra.mxu0 0.0
    %703 = vmatprep.subr.mxu0 0.0
    %704 = vmatpush1.msra.mxu0 0.0
    %705 = vmatprep.subr.mxu0 0.0
    %706 = vmatpush1.msra.mxu0 0.0
    %707 = vmatprep.subr.mxu0 0.0
    %708 = vmatpush1.msra.mxu0 0.0
    %709 = vmatprep.subr.mxu0 0.0
    %710 = vmatpush1.msra.mxu0 0.0
    %711 = vmatprep.subr.mxu0 0.0
    %712 = vmatpush1.msra.mxu0 %v231
    %713 = vmatprep.subr.mxu0 0.0
    %714 = vmatpush1.msra.mxu0 %v230
    %715 = vmatprep.subr.mxu0 0.0
    %716 = vmatpush1.msra.mxu0 %v229
    %717 = vmatprep.subr.mxu0 0.0
    %718 = vmatpush1.msra.mxu0 %v228
    %719 = vmatprep.subr.mxu0 0.0
    %720 = vmatpush2.msra.mxu0 0.0
    %721 = vmatprep.subr.mxu0 0.0
    %722 = vmatpush2.msra.mxu0 0.0
    %723 = vmatprep.subr.mxu0 0.0
    %724 = vmatpush2.msra.mxu0 0.0
    %725 = vmatprep.subr.mxu0 0.0
    %726 = vmatpush2.msra.mxu0 0.0
    %727 = vmatprep.subr.mxu0 0.0
    %728 = vmatpush2.msra.mxu0 0.0
    %729 = vmatprep.subr.mxu0 0.0
    %730 = vmatpush2.msra.mxu0 0.0
    %731 = vmatprep.subr.mxu0 0.0
    %732 = vmatpush2.msra.mxu0 0.0
    %733 = vmatprep.subr.mxu0 0.0
    %734 = vmatpush2.msra.mxu0 0.0
    %735 = vmatprep.subr.mxu0 0.0
    %736 = vmatpush2.msra.mxu0 0.0
    %737 = vmatprep.subr.mxu0 0.0
    %738 = vmatpush2.msra.mxu0 0.0
    %739 = vmatprep.subr.mxu0 0.0
    %740 = vmatpush2.msra.mxu0 0.0
    %741 = vmatprep.subr.mxu0 0.0
    %742 = vmatpush2.msra.mxu0 0.0
    %743 = vmatprep.subr.mxu0 0.0
    %744 = vmatpush2.msra.mxu0 0.0
    %745 = vmatprep.subr.mxu0 0.0
    %746 = vmatpush2.msra.mxu0 0.0
    %747 = vmatprep.subr.mxu0 0.0
    %748 = vmatpush2.msra.mxu0 0.0
    %749 = vmatprep.subr.mxu0 0.0
    %750 = vmatpush2.msra.mxu0 0.0
    %751 = vmatprep.mubr.f32.mxu0 0.0
    %752 = vmatmul.mubr.f32.gmra.mxu0 %v685
    %v753 = vpop.f32.mrf.mxu0
    %v754 = vadd.f32 %v679, %v753
    %v755 = vpop.f32.mrf.mxu0
    %756 = vdwg.mxu0
    %v757 = vadd.f32 %v754, %v241
    %v758 = vxor.u32 %v757, 2147483648
    %v759 = vmul.f32 %v758, 1.442695
    %v760 = vpow.pop %v759
    %v761 = vadd.f32 %v760, 1.0
    %v762 = vrcp.pop %v761
    %v763 = vmul.f32 1.0, %v762
    %v764 = vtanh.pop %v757
    %v765 = vmul.f32 %v763, %v505
    %767 = vrot.lane.b32.xlu0 %v764, 64
    %v768 = vpop.permute.xlu0 %767
    %v770 = vmul.f32 %v763, %v768
    %772 = vrot.lane.b32.xlu0 %v770, 32
    %v773 = vpop.permute.xlu0 %772
    %v775 = vadd.f32 %v765, %v773
    %v776 = vtanh.pop %v775
    %778 = vrot.lane.b32.xlu0 %v776, 64
    %v779 = vpop.permute.xlu0 %778
    %v781 = vmul.f32 %v763, %v779
    %782 = vmatprep.subr.mxu0 0.0
    %783 = vmatpush1.msra.mxu0 0.0
    %784 = vmatprep.subr.mxu0 0.0
    %785 = vmatpush1.msra.mxu0 0.0
    %786 = vmatprep.subr.mxu0 0.0
    %787 = vmatpush1.msra.mxu0 0.0
    %788 = vmatprep.subr.mxu0 0.0
    %789 = vmatpush1.msra.mxu0 0.0
    %790 = vmatprep.subr.mxu0 0.0
    %791 = vmatpush1.msra.mxu0 0.0
    %792 = vmatprep.subr.mxu0 0.0
    %793 = vmatpush1.msra.mxu0 0.0
    %794 = vmatprep.subr.mxu0 0.0
    %795 = vmatpush1.msra.mxu0 0.0
    %796 = vmatprep.subr.mxu0 0.0
    %797 = vmatpush1.msra.mxu0 0.0
    %798 = vmatprep.subr.mxu0 0.0
    %799 = vmatpush1.msra.mxu0 0.0
    %800 = vmatprep.subr.mxu0 0.0
    %801 = vmatpush1.msra.mxu0 0.0
    %802 = vmatprep.subr.mxu0 0.0
    %803 = vmatpush1.msra.mxu0 0.0
    %804 = vmatprep.subr.mxu0 0.0
    %805 = vmatpush1.msra.mxu0 0.0
    %806 = vmatprep.subr.mxu0 0.0
    %807 = vmatpush1.msra.mxu0 %v227
    %808 = vmatprep.subr.mxu0 0.0
    %809 = vmatpush1.msra.mxu0 %v226
    %810 = vmatprep.subr.mxu0 0.0
    %811 = vmatpush1.msra.mxu0 %v225
    %812 = vmatprep.subr.mxu0 0.0
    %813 = vmatpush1.msra.mxu0 %v224
    %814 = vmatprep.subr.mxu0 0.0
    %815 = vmatpush2.msra.mxu0 0.0
    %816 = vmatprep.subr.mxu0 0.0
    %817 = vmatpush2.msra.mxu0 0.0
    %818 = vmatprep.subr.mxu0 0.0
    %819 = vmatpush2.msra.mxu0 0.0
    %820 = vmatprep.subr.mxu0 0.0
    %821 = vmatpush2.msra.mxu0 0.0
    %822 = vmatprep.subr.mxu0 0.0
    %823 = vmatpush2.msra.mxu0 0.0
    %824 = vmatprep.subr.mxu0 0.0
    %825 = vmatpush2.msra.mxu0 0.0
    %826 = vmatprep.subr.mxu0 0.0
    %827 = vmatpush2.msra.mxu0 0.0
    %828 = vmatprep.subr.mxu0 0.0
    %829 = vmatpush2.msra.mxu0 0.0
    %830 = vmatprep.subr.mxu0 0.0
    %831 = vmatpush2.msra.mxu0 0.0
    %832 = vmatprep.subr.mxu0 0.0
    %833 = vmatpush2.msra.mxu0 0.0
    %834 = vmatprep.subr.mxu0 0.0
    %835 = vmatpush2.msra.mxu0 0.0
    %836 = vmatprep.subr.mxu0 0.0
    %837 = vmatpush2.msra.mxu0 0.0
    %838 = vmatprep.subr.mxu0 0.0
    %839 = vmatpush2.msra.mxu0 0.0
    %840 = vmatprep.subr.mxu0 0.0
    %841 = vmatpush2.msra.mxu0 0.0
    %842 = vmatprep.subr.mxu0 0.0
    %843 = vmatpush2.msra.mxu0 0.0
    %844 = vmatprep.subr.mxu0 0.0
    %845 = vmatpush2.msra.mxu0 0.0
    %846 = vmatprep.mubr.f32.mxu0 0.0
    %847 = vmatmul.mubr.f32.gmra.mxu0 %v685
    %v848 = vpop.f32.mrf.mxu0
    %v849 = vadd.f32 0.0, %v848
    %v850 = vpop.f32.mrf.mxu0
    %851 = vdwg.mxu0
    %v852 = vadd.f32 %v196, %v849
    %v853 = vxor.u32 %v852, 2147483648
    %v854 = vmul.f32 %v853, 1.442695
    %v855 = vpow.pop %v854
    %v856 = vadd.f32 %v855, 1.0
    %v857 = vrcp.pop %v856
    %v858 = vmul.f32 1.0, %v857
    %v859 = vtanh.pop %v852
    %v860 = vmul.f32 %v858, %v600
    %862 = vrot.lane.b32.xlu0 %v859, 64
    %v863 = vpop.permute.xlu0 %862
    %v865 = vmul.f32 %v858, %v863
    %867 = vrot.lane.b32.xlu0 %v865, 32
    %v868 = vpop.permute.xlu0 %867
    %v870 = vadd.f32 %v860, %v868
    %v871 = vtanh.pop %v870
    %873 = vrot.lane.b32.xlu0 %v871, 64
    %v874 = vpop.permute.xlu0 %873
    %v876 = vmul.f32 %v858, %v874
    %878 = vrot.lane.b32.xlu0 %v781, 32
    %v879 = vpop.permute.xlu0 %878
    %v880 = vsel %vm243, %v879, 0
    %882 = vmatprep.subr.mxu0 0.0
    %883 = vmatpush1.msra.mxu0 0.0
    %884 = vmatprep.subr.mxu0 0.0
    %885 = vmatpush1.msra.mxu0 0.0
    %886 = vmatprep.subr.mxu0 0.0
    %887 = vmatpush1.msra.mxu0 0.0
    %888 = vmatprep.subr.mxu0 0.0
    %889 = vmatpush1.msra.mxu0 0.0
    %890 = vmatprep.subr.mxu0 0.0
    %891 = vmatpush1.msra.mxu0 0.0
    %892 = vmatprep.subr.mxu0 0.0
    %893 = vmatpush1.msra.mxu0 0.0
    %894 = vmatprep.subr.mxu0 0.0
    %895 = vmatpush1.msra.mxu0 0.0
    %896 = vmatprep.subr.mxu0 0.0
    %897 = vmatpush1.msra.mxu0 0.0
    %898 = vmatprep.subr.mxu0 0.0
    %899 = vmatpush1.msra.mxu0 0.0
    %900 = vmatprep.subr.mxu0 0.0
    %901 = vmatpush1.msra.mxu0 0.0
    %902 = vmatprep.subr.mxu0 0.0
    %903 = vmatpush1.msra.mxu0 0.0
    %904 = vmatprep.subr.mxu0 0.0
    %905 = vmatpush1.msra.mxu0 0.0
    %906 = vmatprep.subr.mxu0 0.0
    %907 = vmatpush1.msra.mxu0 %v235
    %908 = vmatprep.subr.mxu0 0.0
    %909 = vmatpush1.msra.mxu0 %v234
    %910 = vmatprep.subr.mxu0 0.0
    %911 = vmatpush1.msra.mxu0 %v233
    %912 = vmatprep.subr.mxu0 0.0
    %913 = vmatpush1.msra.mxu0 %v232
    %914 = vmatprep.subr.mxu0 0.0
    %915 = vmatpush2.msra.mxu0 0.0
    %916 = vmatprep.subr.mxu0 0.0
    %917 = vmatpush2.msra.mxu0 0.0
    %918 = vmatprep.subr.mxu0 0.0
    %919 = vmatpush2.msra.mxu0 0.0
    %920 = vmatprep.subr.mxu0 0.0
    %921 = vmatpush2.msra.mxu0 0.0
    %922 = vmatprep.subr.mxu0 0.0
    %923 = vmatpush2.msra.mxu0 0.0
    %924 = vmatprep.subr.mxu0 0.0
    %925 = vmatpush2.msra.mxu0 0.0
    %926 = vmatprep.subr.mxu0 0.0
    %927 = vmatpush2.msra.mxu0 0.0
    %928 = vmatprep.subr.mxu0 0.0
    %929 = vmatpush2.msra.mxu0 0.0
    %930 = vmatprep.subr.mxu0 0.0
    %931 = vmatpush2.msra.mxu0 0.0
    %932 = vmatprep.subr.mxu0 0.0
    %933 = vmatpush2.msra.mxu0 0.0
    %934 = vmatprep.subr.mxu0 0.0
    %935 = vmatpush2.msra.mxu0 0.0
    %936 = vmatprep.subr.mxu0 0.0
    %937 = vmatpush2.msra.mxu0 0.0
    %938 = vmatprep.subr.mxu0 0.0
    %939 = vmatpush2.msra.mxu0 0.0
    %940 = vmatprep.subr.mxu0 0.0
    %941 = vmatpush2.msra.mxu0 0.0
    %942 = vmatprep.subr.mxu0 0.0
    %943 = vmatpush2.msra.mxu0 0.0
    %944 = vmatprep.subr.mxu0 0.0
    %945 = vmatpush2.msra.mxu0 0.0
    %946 = vmatprep.mubr.f32.mxu0 0.0
    %947 = vmatmul.mubr.f32.gmra.mxu0 %v880
    %v948 = vpop.f32.mrf.mxu0
    %v949 = vadd.f32 0.0, %v948
    %v950 = vpop.f32.mrf.mxu0
    %951 = vdwg.mxu0
    %953 = vrot.lane.b32.xlu0 %v876, 32
    %v954 = vpop.permute.xlu0 %953
    %v955 = vsel %vm243, %v954, 0
    %957 = vmatprep.subr.mxu0 0.0
    %958 = vmatpush1.msra.mxu0 0.0
    %959 = vmatprep.subr.mxu0 0.0
    %960 = vmatpush1.msra.mxu0 0.0
    %961 = vmatprep.subr.mxu0 0.0
    %962 = vmatpush1.msra.mxu0 0.0
    %963 = vmatprep.subr.mxu0 0.0
    %964 = vmatpush1.msra.mxu0 0.0
    %965 = vmatprep.subr.mxu0 0.0
    %966 = vmatpush1.msra.mxu0 0.0
    %967 = vmatprep.subr.mxu0 0.0
    %968 = vmatpush1.msra.mxu0 0.0
    %969 = vmatprep.subr.mxu0 0.0
    %970 = vmatpush1.msra.mxu0 0.0
    %971 = vmatprep.subr.mxu0 0.0
    %972 = vmatpush1.msra.mxu0 0.0
    %973 = vmatprep.subr.mxu0 0.0
    %974 = vmatpush1.msra.mxu0 0.0
    %975 = vmatprep.subr.mxu0 0.0
    %976 = vmatpush1.msra.mxu0 0.0
    %977 = vmatprep.subr.mxu0 0.0
    %978 = vmatpush1.msra.mxu0 0.0
    %979 = vmatprep.subr.mxu0 0.0
    %980 = vmatpush1.msra.mxu0 0.0
    %981 = vmatprep.subr.mxu0 0.0
    %982 = vmatpush1.msra.mxu0 %v231
    %983 = vmatprep.subr.mxu0 0.0
    %984 = vmatpush1.msra.mxu0 %v230
    %985 = vmatprep.subr.mxu0 0.0
    %986 = vmatpush1.msra.mxu0 %v229
    %987 = vmatprep.subr.mxu0 0.0
    %988 = vmatpush1.msra.mxu0 %v228
    %989 = vmatprep.subr.mxu0 0.0
    %990 = vmatpush2.msra.mxu0 0.0
    %991 = vmatprep.subr.mxu0 0.0
    %992 = vmatpush2.msra.mxu0 0.0
    %993 = vmatprep.subr.mxu0 0.0
    %994 = vmatpush2.msra.mxu0 0.0
    %995 = vmatprep.subr.mxu0 0.0
    %996 = vmatpush2.msra.mxu0 0.0
    %997 = vmatprep.subr.mxu0 0.0
    %998 = vmatpush2.msra.mxu0 0.0
    %999 = vmatprep.subr.mxu0 0.0
    %1000 = vmatpush2.msra.mxu0 0.0
    %1001 = vmatprep.subr.mxu0 0.0
    %1002 = vmatpush2.msra.mxu0 0.0
    %1003 = vmatprep.subr.mxu0 0.0
    %1004 = vmatpush2.msra.mxu0 0.0
    %1005 = vmatprep.subr.mxu0 0.0
    %1006 = vmatpush2.msra.mxu0 0.0
    %1007 = vmatprep.subr.mxu0 0.0
    %1008 = vmatpush2.msra.mxu0 0.0
    %1009 = vmatprep.subr.mxu0 0.0
    %1010 = vmatpush2.msra.mxu0 0.0
    %1011 = vmatprep.subr.mxu0 0.0
    %1012 = vmatpush2.msra.mxu0 0.0
    %1013 = vmatprep.subr.mxu0 0.0
    %1014 = vmatpush2.msra.mxu0 0.0
    %1015 = vmatprep.subr.mxu0 0.0
    %1016 = vmatpush2.msra.mxu0 0.0
    %1017 = vmatprep.subr.mxu0 0.0
    %1018 = vmatpush2.msra.mxu0 0.0
    %1019 = vmatprep.subr.mxu0 0.0
    %1020 = vmatpush2.msra.mxu0 0.0
    %1021 = vmatprep.mubr.f32.mxu0 0.0
    %1022 = vmatmul.mubr.f32.gmra.mxu0 %v955
    %v1023 = vpop.f32.mrf.mxu0
    %v1024 = vadd.f32 %v949, %v1023
    %v1025 = vpop.f32.mrf.mxu0
    %1026 = vdwg.mxu0
    %v1027 = vadd.f32 %v1024, %v241
    %v1028 = vxor.u32 %v1027, 2147483648
    %v1029 = vmul.f32 %v1028, 1.442695
    %v1030 = vpow.pop %v1029
    %v1031 = vadd.f32 %v1030, 1.0
    %v1032 = vrcp.pop %v1031
    %v1033 = vmul.f32 1.0, %v1032
    %v1034 = vtanh.pop %v1027
    %v1035 = vmul.f32 %v1033, %v775
    %1037 = vrot.lane.b32.xlu0 %v1034, 64
    %v1038 = vpop.permute.xlu0 %1037
    %v1040 = vmul.f32 %v1033, %v1038
    %1042 = vrot.lane.b32.xlu0 %v1040, 32
    %v1043 = vpop.permute.xlu0 %1042
    %v1045 = vadd.f32 %v1035, %v1043
    %v1046 = vtanh.pop %v1045
    %1048 = vrot.lane.b32.xlu0 %v1046, 64
    %v1049 = vpop.permute.xlu0 %1048
    %v1051 = vmul.f32 %v1033, %v1049
    %1052 = vmatprep.subr.mxu0 0.0
    %1053 = vmatpush1.msra.mxu0 0.0
    %1054 = vmatprep.subr.mxu0 0.0
    %1055 = vmatpush1.msra.mxu0 0.0
    %1056 = vmatprep.subr.mxu0 0.0
    %1057 = vmatpush1.msra.mxu0 0.0
    %1058 = vmatprep.subr.mxu0 0.0
    %1059 = vmatpush1.msra.mxu0 0.0
    %1060 = vmatprep.subr.mxu0 0.0
    %1061 = vmatpush1.msra.mxu0 0.0
    %1062 = vmatprep.subr.mxu0 0.0
    %1063 = vmatpush1.msra.mxu0 0.0
    %1064 = vmatprep.subr.mxu0 0.0
    %1065 = vmatpush1.msra.mxu0 0.0
    %1066 = vmatprep.subr.mxu0 0.0
    %1067 = vmatpush1.msra.mxu0 0.0
    %1068 = vmatprep.subr.mxu0 0.0
    %1069 = vmatpush1.msra.mxu0 0.0
    %1070 = vmatprep.subr.mxu0 0.0
    %1071 = vmatpush1.msra.mxu0 0.0
    %1072 = vmatprep.subr.mxu0 0.0
    %1073 = vmatpush1.msra.mxu0 0.0
    %1074 = vmatprep.subr.mxu0 0.0
    %1075 = vmatpush1.msra.mxu0 0.0
    %1076 = vmatprep.subr.mxu0 0.0
    %1077 = vmatpush1.msra.mxu0 %v227
    %1078 = vmatprep.subr.mxu0 0.0
    %1079 = vmatpush1.msra.mxu0 %v226
    %1080 = vmatprep.subr.mxu0 0.0
    %1081 = vmatpush1.msra.mxu0 %v225
    %1082 = vmatprep.subr.mxu0 0.0
    %1083 = vmatpush1.msra.mxu0 %v224
    %1084 = vmatprep.subr.mxu0 0.0
    %1085 = vmatpush2.msra.mxu0 0.0
    %1086 = vmatprep.subr.mxu0 0.0
    %1087 = vmatpush2.msra.mxu0 0.0
    %1088 = vmatprep.subr.mxu0 0.0
    %1089 = vmatpush2.msra.mxu0 0.0
    %1090 = vmatprep.subr.mxu0 0.0
    %1091 = vmatpush2.msra.mxu0 0.0
    %1092 = vmatprep.subr.mxu0 0.0
    %1093 = vmatpush2.msra.mxu0 0.0
    %1094 = vmatprep.subr.mxu0 0.0
    %1095 = vmatpush2.msra.mxu0 0.0
    %1096 = vmatprep.subr.mxu0 0.0
    %1097 = vmatpush2.msra.mxu0 0.0
    %1098 = vmatprep.subr.mxu0 0.0
    %1099 = vmatpush2.msra.mxu0 0.0
    %1100 = vmatprep.subr.mxu0 0.0
    %1101 = vmatpush2.msra.mxu0 0.0
    %1102 = vmatprep.subr.mxu0 0.0
    %1103 = vmatpush2.msra.mxu0 0.0
    %1104 = vmatprep.subr.mxu0 0.0
    %1105 = vmatpush2.msra.mxu0 0.0
    %1106 = vmatprep.subr.mxu0 0.0
    %1107 = vmatpush2.msra.mxu0 0.0
    %1108 = vmatprep.subr.mxu0 0.0
    %1109 = vmatpush2.msra.mxu0 0.0
    %1110 = vmatprep.subr.mxu0 0.0
    %1111 = vmatpush2.msra.mxu0 0.0
    %1112 = vmatprep.subr.mxu0 0.0
    %1113 = vmatpush2.msra.mxu0 0.0
    %1114 = vmatprep.subr.mxu0 0.0
    %1115 = vmatpush2.msra.mxu0 0.0
    %1116 = vmatprep.mubr.f32.mxu0 0.0
    %1117 = vmatmul.mubr.f32.gmra.mxu0 %v955
    %v1118 = vpop.f32.mrf.mxu0
    %v1119 = vadd.f32 0.0, %v1118
    %v1120 = vpop.f32.mrf.mxu0
    %1121 = vdwg.mxu0
    %v1122 = vadd.f32 %v201, %v1119
    %v1123 = vxor.u32 %v1122, 2147483648
    %v1124 = vmul.f32 %v1123, 1.442695
    %v1125 = vpow.pop %v1124
    %v1126 = vadd.f32 %v1125, 1.0
    %v1127 = vrcp.pop %v1126
    %v1128 = vmul.f32 1.0, %v1127
    %v1129 = vtanh.pop %v1122
    %v1130 = vmul.f32 %v1128, %v870
    %1132 = vrot.lane.b32.xlu0 %v1129, 64
    %v1133 = vpop.permute.xlu0 %1132
    %v1135 = vmul.f32 %v1128, %v1133
    %1137 = vrot.lane.b32.xlu0 %v1135, 32
    %v1138 = vpop.permute.xlu0 %1137
    %v1140 = vadd.f32 %v1130, %v1138
    %v1141 = vtanh.pop %v1140
    %1143 = vrot.lane.b32.xlu0 %v1141, 64
    %v1144 = vpop.permute.xlu0 %1143
    %v1146 = vmul.f32 %v1128, %v1144
    %1148 = vrot.lane.b32.xlu0 %v1051, 32
    %v1149 = vpop.permute.xlu0 %1148
    %v1150 = vsel %vm243, %v1149, 0
    %1152 = vmatprep.subr.mxu0 0.0
    %1153 = vmatpush1.msra.mxu0 0.0
    %1154 = vmatprep.subr.mxu0 0.0
    %1155 = vmatpush1.msra.mxu0 0.0
    %1156 = vmatprep.subr.mxu0 0.0
    %1157 = vmatpush1.msra.mxu0 0.0
    %1158 = vmatprep.subr.mxu0 0.0
    %1159 = vmatpush1.msra.mxu0 0.0
    %1160 = vmatprep.subr.mxu0 0.0
    %1161 = vmatpush1.msra.mxu0 0.0
    %1162 = vmatprep.subr.mxu0 0.0
    %1163 = vmatpush1.msra.mxu0 0.0
    %1164 = vmatprep.subr.mxu0 0.0
    %1165 = vmatpush1.msra.mxu0 0.0
    %1166 = vmatprep.subr.mxu0 0.0
    %1167 = vmatpush1.msra.mxu0 0.0
    %1168 = vmatprep.subr.mxu0 0.0
    %1169 = vmatpush1.msra.mxu0 0.0
    %1170 = vmatprep.subr.mxu0 0.0
    %1171 = vmatpush1.msra.mxu0 0.0
    %1172 = vmatprep.subr.mxu0 0.0
    %1173 = vmatpush1.msra.mxu0 0.0
    %1174 = vmatprep.subr.mxu0 0.0
    %1175 = vmatpush1.msra.mxu0 0.0
    %1176 = vmatprep.subr.mxu0 0.0
    %1177 = vmatpush1.msra.mxu0 %v235
    %1178 = vmatprep.subr.mxu0 0.0
    %1179 = vmatpush1.msra.mxu0 %v234
    %1180 = vmatprep.subr.mxu0 0.0
    %1181 = vmatpush1.msra.mxu0 %v233
    %1182 = vmatprep.subr.mxu0 0.0
    %1183 = vmatpush1.msra.mxu0 %v232
    %1184 = vmatprep.subr.mxu0 0.0
    %1185 = vmatpush2.msra.mxu0 0.0
    %1186 = vmatprep.subr.mxu0 0.0
    %1187 = vmatpush2.msra.mxu0 0.0
    %1188 = vmatprep.subr.mxu0 0.0
    %1189 = vmatpush2.msra.mxu0 0.0
    %1190 = vmatprep.subr.mxu0 0.0
    %1191 = vmatpush2.msra.mxu0 0.0
    %1192 = vmatprep.subr.mxu0 0.0
    %1193 = vmatpush2.msra.mxu0 0.0
    %1194 = vmatprep.subr.mxu0 0.0
    %1195 = vmatpush2.msra.mxu0 0.0
    %1196 = vmatprep.subr.mxu0 0.0
    %1197 = vmatpush2.msra.mxu0 0.0
    %1198 = vmatprep.subr.mxu0 0.0
    %1199 = vmatpush2.msra.mxu0 0.0
    %1200 = vmatprep.subr.mxu0 0.0
    %1201 = vmatpush2.msra.mxu0 0.0
    %1202 = vmatprep.subr.mxu0 0.0
    %1203 = vmatpush2.msra.mxu0 0.0
    %1204 = vmatprep.subr.mxu0 0.0
    %1205 = vmatpush2.msra.mxu0 0.0
    %1206 = vmatprep.subr.mxu0 0.0
    %1207 = vmatpush2.msra.mxu0 0.0
    %1208 = vmatprep.subr.mxu0 0.0
    %1209 = vmatpush2.msra.mxu0 0.0
    %1210 = vmatprep.subr.mxu0 0.0
    %1211 = vmatpush2.msra.mxu0 0.0
    %1212 = vmatprep.subr.mxu0 0.0
    %1213 = vmatpush2.msra.mxu0 0.0
    %1214 = vmatprep.subr.mxu0 0.0
    %1215 = vmatpush2.msra.mxu0 0.0
    %1216 = vmatprep.mubr.f32.mxu0 0.0
    %1217 = vmatmul.mubr.f32.gmra.mxu0 %v1150
    %v1218 = vpop.f32.mrf.mxu0
    %v1219 = vadd.f32 0.0, %v1218
    %v1220 = vpop.f32.mrf.mxu0
    %1221 = vdwg.mxu0
    %1223 = vrot.lane.b32.xlu0 %v1146, 32
    %v1224 = vpop.permute.xlu0 %1223
    %v1225 = vsel %vm243, %v1224, 0
    %1227 = vmatprep.subr.mxu0 0.0
    %1228 = vmatpush1.msra.mxu0 0.0
    %1229 = vmatprep.subr.mxu0 0.0
    %1230 = vmatpush1.msra.mxu0 0.0
    %1231 = vmatprep.subr.mxu0 0.0
    %1232 = vmatpush1.msra.mxu0 0.0
    %1233 = vmatprep.subr.mxu0 0.0
    %1234 = vmatpush1.msra.mxu0 0.0
    %1235 = vmatprep.subr.mxu0 0.0
    %1236 = vmatpush1.msra.mxu0 0.0
    %1237 = vmatprep.subr.mxu0 0.0
    %1238 = vmatpush1.msra.mxu0 0.0
    %1239 = vmatprep.subr.mxu0 0.0
    %1240 = vmatpush1.msra.mxu0 0.0
    %1241 = vmatprep.subr.mxu0 0.0
    %1242 = vmatpush1.msra.mxu0 0.0
    %1243 = vmatprep.subr.mxu0 0.0
    %1244 = vmatpush1.msra.mxu0 0.0
    %1245 = vmatprep.subr.mxu0 0.0
    %1246 = vmatpush1.msra.mxu0 0.0
    %1247 = vmatprep.subr.mxu0 0.0
    %1248 = vmatpush1.msra.mxu0 0.0
    %1249 = vmatprep.subr.mxu0 0.0
    %1250 = vmatpush1.msra.mxu0 0.0
    %1251 = vmatprep.subr.mxu0 0.0
    %1252 = vmatpush1.msra.mxu0 %v231
    %1253 = vmatprep.subr.mxu0 0.0
    %1254 = vmatpush1.msra.mxu0 %v230
    %1255 = vmatprep.subr.mxu0 0.0
    %1256 = vmatpush1.msra.mxu0 %v229
    %1257 = vmatprep.subr.mxu0 0.0
    %1258 = vmatpush1.msra.mxu0 %v228
    %1259 = vmatprep.subr.mxu0 0.0
    %1260 = vmatpush2.msra.mxu0 0.0
    %1261 = vmatprep.subr.mxu0 0.0
    %1262 = vmatpush2.msra.mxu0 0.0
    %1263 = vmatprep.subr.mxu0 0.0
    %1264 = vmatpush2.msra.mxu0 0.0
    %1265 = vmatprep.subr.mxu0 0.0
    %1266 = vmatpush2.msra.mxu0 0.0
    %1267 = vmatprep.subr.mxu0 0.0
    %1268 = vmatpush2.msra.mxu0 0.0
    %1269 = vmatprep.subr.mxu0 0.0
    %1270 = vmatpush2.msra.mxu0 0.0
    %1271 = vmatprep.subr.mxu0 0.0
    %1272 = vmatpush2.msra.mxu0 0.0
    %1273 = vmatprep.subr.mxu0 0.0
    %1274 = vmatpush2.msra.mxu0 0.0
    %1275 = vmatprep.subr.mxu0 0.0
    %1276 = vmatpush2.msra.mxu0 0.0
    %1277 = vmatprep.subr.mxu0 0.0
    %1278 = vmatpush2.msra.mxu0 0.0
    %1279 = vmatprep.subr.mxu0 0.0
    %1280 = vmatpush2.msra.mxu0 0.0
    %1281 = vmatprep.subr.mxu0 0.0
    %1282 = vmatpush2.msra.mxu0 0.0
    %1283 = vmatprep.subr.mxu0 0.0
    %1284 = vmatpush2.msra.mxu0 0.0
    %1285 = vmatprep.subr.mxu0 0.0
    %1286 = vmatpush2.msra.mxu0 0.0
    %1287 = vmatprep.subr.mxu0 0.0
    %1288 = vmatpush2.msra.mxu0 0.0
    %1289 = vmatprep.subr.mxu0 0.0
    %1290 = vmatpush2.msra.mxu0 0.0
    %1291 = vmatprep.mubr.f32.mxu0 0.0
    %1292 = vmatmul.mubr.f32.gmra.mxu0 %v1225
    %v1293 = vpop.f32.mrf.mxu0
    %v1294 = vadd.f32 %v1219, %v1293
    %v1295 = vpop.f32.mrf.mxu0
    %1296 = vdwg.mxu0
    %v1297 = vadd.f32 %v1294, %v241
    %v1298 = vxor.u32 %v1297, 2147483648
    %v1299 = vmul.f32 %v1298, 1.442695
    %v1300 = vpow.pop %v1299
    %v1301 = vadd.f32 %v1300, 1.0
    %v1302 = vrcp.pop %v1301
    %v1303 = vmul.f32 1.0, %v1302
    %v1304 = vtanh.pop %v1297
    %v1305 = vmul.f32 %v1303, %v1045
    %1307 = vrot.lane.b32.xlu0 %v1304, 64
    %v1308 = vpop.permute.xlu0 %1307
    %v1310 = vmul.f32 %v1303, %v1308
    %1312 = vrot.lane.b32.xlu0 %v1310, 32
    %v1313 = vpop.permute.xlu0 %1312
    %v1315 = vadd.f32 %v1305, %v1313
    %v1316 = vtanh.pop %v1315
    %1318 = vrot.lane.b32.xlu0 %v1316, 64
    %v1319 = vpop.permute.xlu0 %1318
    %v1321 = vmul.f32 %v1303, %v1319
    %1322 = vmatprep.subr.mxu0 0.0
    %1323 = vmatpush1.msra.mxu0 0.0
    %1324 = vmatprep.subr.mxu0 0.0
    %1325 = vmatpush1.msra.mxu0 0.0
    %1326 = vmatprep.subr.mxu0 0.0
    %1327 = vmatpush1.msra.mxu0 0.0
    %1328 = vmatprep.subr.mxu0 0.0
    %1329 = vmatpush1.msra.mxu0 0.0
    %1330 = vmatprep.subr.mxu0 0.0
    %1331 = vmatpush1.msra.mxu0 0.0
    %1332 = vmatprep.subr.mxu0 0.0
    %1333 = vmatpush1.msra.mxu0 0.0
    %1334 = vmatprep.subr.mxu0 0.0
    %1335 = vmatpush1.msra.mxu0 0.0
    %1336 = vmatprep.subr.mxu0 0.0
    %1337 = vmatpush1.msra.mxu0 0.0
    %1338 = vmatprep.subr.mxu0 0.0
    %1339 = vmatpush1.msra.mxu0 0.0
    %1340 = vmatprep.subr.mxu0 0.0
    %1341 = vmatpush1.msra.mxu0 0.0
    %1342 = vmatprep.subr.mxu0 0.0
    %1343 = vmatpush1.msra.mxu0 0.0
    %1344 = vmatprep.subr.mxu0 0.0
    %1345 = vmatpush1.msra.mxu0 0.0
    %1346 = vmatprep.subr.mxu0 0.0
    %1347 = vmatpush1.msra.mxu0 %v227
    %1348 = vmatprep.subr.mxu0 0.0
    %1349 = vmatpush1.msra.mxu0 %v226
    %1350 = vmatprep.subr.mxu0 0.0
    %1351 = vmatpush1.msra.mxu0 %v225
    %1352 = vmatprep.subr.mxu0 0.0
    %1353 = vmatpush1.msra.mxu0 %v224
    %1354 = vmatprep.subr.mxu0 0.0
    %1355 = vmatpush2.msra.mxu0 0.0
    %1356 = vmatprep.subr.mxu0 0.0
    %1357 = vmatpush2.msra.mxu0 0.0
    %1358 = vmatprep.subr.mxu0 0.0
    %1359 = vmatpush2.msra.mxu0 0.0
    %1360 = vmatprep.subr.mxu0 0.0
    %1361 = vmatpush2.msra.mxu0 0.0
    %1362 = vmatprep.subr.mxu0 0.0
    %1363 = vmatpush2.msra.mxu0 0.0
    %1364 = vmatprep.subr.mxu0 0.0
    %1365 = vmatpush2.msra.mxu0 0.0
    %1366 = vmatprep.subr.mxu0 0.0
    %1367 = vmatpush2.msra.mxu0 0.0
    %1368 = vmatprep.subr.mxu0 0.0
    %1369 = vmatpush2.msra.mxu0 0.0
    %1370 = vmatprep.subr.mxu0 0.0
    %1371 = vmatpush2.msra.mxu0 0.0
    %1372 = vmatprep.subr.mxu0 0.0
    %1373 = vmatpush2.msra.mxu0 0.0
    %1374 = vmatprep.subr.mxu0 0.0
    %1375 = vmatpush2.msra.mxu0 0.0
    %1376 = vmatprep.subr.mxu0 0.0
    %1377 = vmatpush2.msra.mxu0 0.0
    %1378 = vmatprep.subr.mxu0 0.0
    %1379 = vmatpush2.msra.mxu0 0.0
    %1380 = vmatprep.subr.mxu0 0.0
    %1381 = vmatpush2.msra.mxu0 0.0
    %1382 = vmatprep.subr.mxu0 0.0
    %1383 = vmatpush2.msra.mxu0 0.0
    %1384 = vmatprep.subr.mxu0 0.0
    %1385 = vmatpush2.msra.mxu0 0.0
    %1386 = vmatprep.mubr.f32.mxu0 0.0
    %1387 = vmatmul.mubr.f32.gmra.mxu0 %v1225
    %v1388 = vpop.f32.mrf.mxu0
    %v1389 = vadd.f32 0.0, %v1388
    %v1390 = vpop.f32.mrf.mxu0
    %1391 = vdwg.mxu0
    %v1392 = vadd.f32 %v206, %v1389
    %v1393 = vxor.u32 %v1392, 2147483648
    %v1394 = vmul.f32 %v1393, 1.442695
    %v1395 = vpow.pop %v1394
    %v1396 = vadd.f32 %v1395, 1.0
    %v1397 = vrcp.pop %v1396
    %v1398 = vmul.f32 1.0, %v1397
    %v1399 = vtanh.pop %v1392
    %v1400 = vmul.f32 %v1398, %v1140
    %1402 = vrot.lane.b32.xlu0 %v1399, 64
    %v1403 = vpop.permute.xlu0 %1402
    %v1405 = vmul.f32 %v1398, %v1403
    %1407 = vrot.lane.b32.xlu0 %v1405, 32
    %v1408 = vpop.permute.xlu0 %1407
    %v1410 = vadd.f32 %v1400, %v1408
    %v1411 = vtanh.pop %v1410
    %1413 = vrot.lane.b32.xlu0 %v1411, 64
    %v1414 = vpop.permute.xlu0 %1413
    %v1416 = vmul.f32 %v1398, %v1414
    %1418 = vrot.lane.b32.xlu0 %v1321, 32
    %v1419 = vpop.permute.xlu0 %1418
    %v1420 = vsel %vm243, %v1419, 0
    %1422 = vmatprep.subr.mxu0 0.0
    %1423 = vmatpush1.msra.mxu0 0.0
    %1424 = vmatprep.subr.mxu0 0.0
    %1425 = vmatpush1.msra.mxu0 0.0
    %1426 = vmatprep.subr.mxu0 0.0
    %1427 = vmatpush1.msra.mxu0 0.0
    %1428 = vmatprep.subr.mxu0 0.0
    %1429 = vmatpush1.msra.mxu0 0.0
    %1430 = vmatprep.subr.mxu0 0.0
    %1431 = vmatpush1.msra.mxu0 0.0
    %1432 = vmatprep.subr.mxu0 0.0
    %1433 = vmatpush1.msra.mxu0 0.0
    %1434 = vmatprep.subr.mxu0 0.0
    %1435 = vmatpush1.msra.mxu0 0.0
    %1436 = vmatprep.subr.mxu0 0.0
    %1437 = vmatpush1.msra.mxu0 0.0
    %1438 = vmatprep.subr.mxu0 0.0
    %1439 = vmatpush1.msra.mxu0 0.0
    %1440 = vmatprep.subr.mxu0 0.0
    %1441 = vmatpush1.msra.mxu0 0.0
    %1442 = vmatprep.subr.mxu0 0.0
    %1443 = vmatpush1.msra.mxu0 0.0
    %1444 = vmatprep.subr.mxu0 0.0
    %1445 = vmatpush1.msra.mxu0 0.0
    %1446 = vmatprep.subr.mxu0 0.0
    %1447 = vmatpush1.msra.mxu0 %v235
    %1448 = vmatprep.subr.mxu0 0.0
    %1449 = vmatpush1.msra.mxu0 %v234
    %1450 = vmatprep.subr.mxu0 0.0
    %1451 = vmatpush1.msra.mxu0 %v233
    %1452 = vmatprep.subr.mxu0 0.0
    %1453 = vmatpush1.msra.mxu0 %v232
    %1454 = vmatprep.subr.mxu0 0.0
    %1455 = vmatpush2.msra.mxu0 0.0
    %1456 = vmatprep.subr.mxu0 0.0
    %1457 = vmatpush2.msra.mxu0 0.0
    %1458 = vmatprep.subr.mxu0 0.0
    %1459 = vmatpush2.msra.mxu0 0.0
    %1460 = vmatprep.subr.mxu0 0.0
    %1461 = vmatpush2.msra.mxu0 0.0
    %1462 = vmatprep.subr.mxu0 0.0
    %1463 = vmatpush2.msra.mxu0 0.0
    %1464 = vmatprep.subr.mxu0 0.0
    %1465 = vmatpush2.msra.mxu0 0.0
    %1466 = vmatprep.subr.mxu0 0.0
    %1467 = vmatpush2.msra.mxu0 0.0
    %1468 = vmatprep.subr.mxu0 0.0
    %1469 = vmatpush2.msra.mxu0 0.0
    %1470 = vmatprep.subr.mxu0 0.0
    %1471 = vmatpush2.msra.mxu0 0.0
    %1472 = vmatprep.subr.mxu0 0.0
    %1473 = vmatpush2.msra.mxu0 0.0
    %1474 = vmatprep.subr.mxu0 0.0
    %1475 = vmatpush2.msra.mxu0 0.0
    %1476 = vmatprep.subr.mxu0 0.0
    %1477 = vmatpush2.msra.mxu0 0.0
    %1478 = vmatprep.subr.mxu0 0.0
    %1479 = vmatpush2.msra.mxu0 0.0
    %1480 = vmatprep.subr.mxu0 0.0
    %1481 = vmatpush2.msra.mxu0 0.0
    %1482 = vmatprep.subr.mxu0 0.0
    %1483 = vmatpush2.msra.mxu0 0.0
    %1484 = vmatprep.subr.mxu0 0.0
    %1485 = vmatpush2.msra.mxu0 0.0
    %1486 = vmatprep.mubr.f32.mxu0 0.0
    %1487 = vmatmul.mubr.f32.gmra.mxu0 %v1420
    %v1488 = vpop.f32.mrf.mxu0
    %v1489 = vadd.f32 0.0, %v1488
    %v1490 = vpop.f32.mrf.mxu0
    %1491 = vdwg.mxu0
    %1493 = vrot.lane.b32.xlu0 %v1416, 32
    %v1494 = vpop.permute.xlu0 %1493
    %v1495 = vsel %vm243, %v1494, 0
    %1497 = vmatprep.subr.mxu0 0.0
    %1498 = vmatpush1.msra.mxu0 0.0
    %1499 = vmatprep.subr.mxu0 0.0
    %1500 = vmatpush1.msra.mxu0 0.0
    %1501 = vmatprep.subr.mxu0 0.0
    %1502 = vmatpush1.msra.mxu0 0.0
    %1503 = vmatprep.subr.mxu0 0.0
    %1504 = vmatpush1.msra.mxu0 0.0
    %1505 = vmatprep.subr.mxu0 0.0
    %1506 = vmatpush1.msra.mxu0 0.0
    %1507 = vmatprep.subr.mxu0 0.0
    %1508 = vmatpush1.msra.mxu0 0.0
    %1509 = vmatprep.subr.mxu0 0.0
    %1510 = vmatpush1.msra.mxu0 0.0
    %1511 = vmatprep.subr.mxu0 0.0
    %1512 = vmatpush1.msra.mxu0 0.0
    %1513 = vmatprep.subr.mxu0 0.0
    %1514 = vmatpush1.msra.mxu0 0.0
    %1515 = vmatprep.subr.mxu0 0.0
    %1516 = vmatpush1.msra.mxu0 0.0
    %1517 = vmatprep.subr.mxu0 0.0
    %1518 = vmatpush1.msra.mxu0 0.0
    %1519 = vmatprep.subr.mxu0 0.0
    %1520 = vmatpush1.msra.mxu0 0.0
    %1521 = vmatprep.subr.mxu0 0.0
    %1522 = vmatpush1.msra.mxu0 %v231
    %1523 = vmatprep.subr.mxu0 0.0
    %1524 = vmatpush1.msra.mxu0 %v230
    %1525 = vmatprep.subr.mxu0 0.0
    %1526 = vmatpush1.msra.mxu0 %v229
    %1527 = vmatprep.subr.mxu0 0.0
    %1528 = vmatpush1.msra.mxu0 %v228
    %1529 = vmatprep.subr.mxu0 0.0
    %1530 = vmatpush2.msra.mxu0 0.0
    %1531 = vmatprep.subr.mxu0 0.0
    %1532 = vmatpush2.msra.mxu0 0.0
    %1533 = vmatprep.subr.mxu0 0.0
    %1534 = vmatpush2.msra.mxu0 0.0
    %1535 = vmatprep.subr.mxu0 0.0
    %1536 = vmatpush2.msra.mxu0 0.0
    %1537 = vmatprep.subr.mxu0 0.0
    %1538 = vmatpush2.msra.mxu0 0.0
    %1539 = vmatprep.subr.mxu0 0.0
    %1540 = vmatpush2.msra.mxu0 0.0
    %1541 = vmatprep.subr.mxu0 0.0
    %1542 = vmatpush2.msra.mxu0 0.0
    %1543 = vmatprep.subr.mxu0 0.0
    %1544 = vmatpush2.msra.mxu0 0.0
    %1545 = vmatprep.subr.mxu0 0.0
    %1546 = vmatpush2.msra.mxu0 0.0
    %1547 = vmatprep.subr.mxu0 0.0
    %1548 = vmatpush2.msra.mxu0 0.0
    %1549 = vmatprep.subr.mxu0 0.0
    %1550 = vmatpush2.msra.mxu0 0.0
    %1551 = vmatprep.subr.mxu0 0.0
    %1552 = vmatpush2.msra.mxu0 0.0
    %1553 = vmatprep.subr.mxu0 0.0
    %1554 = vmatpush2.msra.mxu0 0.0
    %1555 = vmatprep.subr.mxu0 0.0
    %1556 = vmatpush2.msra.mxu0 0.0
    %1557 = vmatprep.subr.mxu0 0.0
    %1558 = vmatpush2.msra.mxu0 0.0
    %1559 = vmatprep.subr.mxu0 0.0
    %1560 = vmatpush2.msra.mxu0 0.0
    %1561 = vmatprep.mubr.f32.mxu0 0.0
    %1562 = vmatmul.mubr.f32.gmra.mxu0 %v1495
    %v1563 = vpop.f32.mrf.mxu0
    %v1564 = vadd.f32 %v1489, %v1563
    %v1565 = vpop.f32.mrf.mxu0
    %1566 = vdwg.mxu0
    %v1567 = vadd.f32 %v1564, %v241
    %v1568 = vxor.u32 %v1567, 2147483648
    %v1569 = vmul.f32 %v1568, 1.442695
    %v1570 = vpow.pop %v1569
    %v1571 = vadd.f32 %v1570, 1.0
    %v1572 = vrcp.pop %v1571
    %v1573 = vmul.f32 1.0, %v1572
    %v1574 = vtanh.pop %v1567
    %v1575 = vmul.f32 %v1573, %v1315
    %1577 = vrot.lane.b32.xlu0 %v1574, 64
    %v1578 = vpop.permute.xlu0 %1577
    %v1580 = vmul.f32 %v1573, %v1578
    %1582 = vrot.lane.b32.xlu0 %v1580, 32
    %v1583 = vpop.permute.xlu0 %1582
    %v1585 = vadd.f32 %v1575, %v1583
    %v1586 = vtanh.pop %v1585
    %1588 = vrot.lane.b32.xlu0 %v1586, 64
    %v1589 = vpop.permute.xlu0 %1588
    %v1591 = vmul.f32 %v1573, %v1589
    %1592 = vmatprep.subr.mxu0 0.0
    %1593 = vmatpush1.msra.mxu0 0.0
    %1594 = vmatprep.subr.mxu0 0.0
    %1595 = vmatpush1.msra.mxu0 0.0
    %1596 = vmatprep.subr.mxu0 0.0
    %1597 = vmatpush1.msra.mxu0 0.0
    %1598 = vmatprep.subr.mxu0 0.0
    %1599 = vmatpush1.msra.mxu0 0.0
    %1600 = vmatprep.subr.mxu0 0.0
    %1601 = vmatpush1.msra.mxu0 0.0
    %1602 = vmatprep.subr.mxu0 0.0
    %1603 = vmatpush1.msra.mxu0 0.0
    %1604 = vmatprep.subr.mxu0 0.0
    %1605 = vmatpush1.msra.mxu0 0.0
    %1606 = vmatprep.subr.mxu0 0.0
    %1607 = vmatpush1.msra.mxu0 0.0
    %1608 = vmatprep.subr.mxu0 0.0
    %1609 = vmatpush1.msra.mxu0 0.0
    %1610 = vmatprep.subr.mxu0 0.0
    %1611 = vmatpush1.msra.mxu0 0.0
    %1612 = vmatprep.subr.mxu0 0.0
    %1613 = vmatpush1.msra.mxu0 0.0
    %1614 = vmatprep.subr.mxu0 0.0
    %1615 = vmatpush1.msra.mxu0 0.0
    %1616 = vmatprep.subr.mxu0 0.0
    %1617 = vmatpush1.msra.mxu0 %v227
    %1618 = vmatprep.subr.mxu0 0.0
    %1619 = vmatpush1.msra.mxu0 %v226
    %1620 = vmatprep.subr.mxu0 0.0
    %1621 = vmatpush1.msra.mxu0 %v225
    %1622 = vmatprep.subr.mxu0 0.0
    %1623 = vmatpush1.msra.mxu0 %v224
    %1624 = vmatprep.subr.mxu0 0.0
    %1625 = vmatpush2.msra.mxu0 0.0
    %1626 = vmatprep.subr.mxu0 0.0
    %1627 = vmatpush2.msra.mxu0 0.0
    %1628 = vmatprep.subr.mxu0 0.0
    %1629 = vmatpush2.msra.mxu0 0.0
    %1630 = vmatprep.subr.mxu0 0.0
    %1631 = vmatpush2.msra.mxu0 0.0
    %1632 = vmatprep.subr.mxu0 0.0
    %1633 = vmatpush2.msra.mxu0 0.0
    %1634 = vmatprep.subr.mxu0 0.0
    %1635 = vmatpush2.msra.mxu0 0.0
    %1636 = vmatprep.subr.mxu0 0.0
    %1637 = vmatpush2.msra.mxu0 0.0
    %1638 = vmatprep.subr.mxu0 0.0
    %1639 = vmatpush2.msra.mxu0 0.0
    %1640 = vmatprep.subr.mxu0 0.0
    %1641 = vmatpush2.msra.mxu0 0.0
    %1642 = vmatprep.subr.mxu0 0.0
    %1643 = vmatpush2.msra.mxu0 0.0
    %1644 = vmatprep.subr.mxu0 0.0
    %1645 = vmatpush2.msra.mxu0 0.0
    %1646 = vmatprep.subr.mxu0 0.0
    %1647 = vmatpush2.msra.mxu0 0.0
    %1648 = vmatprep.subr.mxu0 0.0
    %1649 = vmatpush2.msra.mxu0 0.0
    %1650 = vmatprep.subr.mxu0 0.0
    %1651 = vmatpush2.msra.mxu0 0.0
    %1652 = vmatprep.subr.mxu0 0.0
    %1653 = vmatpush2.msra.mxu0 0.0
    %1654 = vmatprep.subr.mxu0 0.0
    %1655 = vmatpush2.msra.mxu0 0.0
    %1656 = vmatprep.mubr.f32.mxu0 0.0
    %1657 = vmatmul.mubr.f32.gmra.mxu0 %v1495
    %v1658 = vpop.f32.mrf.mxu0
    %v1659 = vadd.f32 0.0, %v1658
    %v1660 = vpop.f32.mrf.mxu0
    %1661 = vdwg.mxu0
    %v1662 = vadd.f32 %v211, %v1659
    %v1663 = vxor.u32 %v1662, 2147483648
    %v1664 = vmul.f32 %v1663, 1.442695
    %v1665 = vpow.pop %v1664
    %v1666 = vadd.f32 %v1665, 1.0
    %v1667 = vrcp.pop %v1666
    %v1668 = vmul.f32 1.0, %v1667
    %v1669 = vtanh.pop %v1662
    %v1670 = vmul.f32 %v1668, %v1410
    %1672 = vrot.lane.b32.xlu0 %v1669, 64
    %v1673 = vpop.permute.xlu0 %1672
    %v1675 = vmul.f32 %v1668, %v1673
    %1677 = vrot.lane.b32.xlu0 %v1675, 32
    %v1678 = vpop.permute.xlu0 %1677
    %v1680 = vadd.f32 %v1670, %v1678
    %v1681 = vtanh.pop %v1680
    %1683 = vrot.lane.b32.xlu0 %v1681, 64
    %v1684 = vpop.permute.xlu0 %1683
    %v1686 = vmul.f32 %v1668, %v1684
    %1688 = vrot.lane.b32.xlu0 %v1591, 32
    %v1689 = vpop.permute.xlu0 %1688
    %v1690 = vsel %vm243, %v1689, 0
    %1692 = vmatprep.subr.mxu0 0.0
    %1693 = vmatpush1.msra.mxu0 0.0
    %1694 = vmatprep.subr.mxu0 0.0
    %1695 = vmatpush1.msra.mxu0 0.0
    %1696 = vmatprep.subr.mxu0 0.0
    %1697 = vmatpush1.msra.mxu0 0.0
    %1698 = vmatprep.subr.mxu0 0.0
    %1699 = vmatpush1.msra.mxu0 0.0
    %1700 = vmatprep.subr.mxu0 0.0
    %1701 = vmatpush1.msra.mxu0 0.0
    %1702 = vmatprep.subr.mxu0 0.0
    %1703 = vmatpush1.msra.mxu0 0.0
    %1704 = vmatprep.subr.mxu0 0.0
    %1705 = vmatpush1.msra.mxu0 0.0
    %1706 = vmatprep.subr.mxu0 0.0
    %1707 = vmatpush1.msra.mxu0 0.0
    %1708 = vmatprep.subr.mxu0 0.0
    %1709 = vmatpush1.msra.mxu0 0.0
    %1710 = vmatprep.subr.mxu0 0.0
    %1711 = vmatpush1.msra.mxu0 0.0
    %1712 = vmatprep.subr.mxu0 0.0
    %1713 = vmatpush1.msra.mxu0 0.0
    %1714 = vmatprep.subr.mxu0 0.0
    %1715 = vmatpush1.msra.mxu0 0.0
    %1716 = vmatprep.subr.mxu0 0.0
    %1717 = vmatpush1.msra.mxu0 %v235
    %1718 = vmatprep.subr.mxu0 0.0
    %1719 = vmatpush1.msra.mxu0 %v234
    %1720 = vmatprep.subr.mxu0 0.0
    %1721 = vmatpush1.msra.mxu0 %v233
    %1722 = vmatprep.subr.mxu0 0.0
    %1723 = vmatpush1.msra.mxu0 %v232
    %1724 = vmatprep.subr.mxu0 0.0
    %1725 = vmatpush2.msra.mxu0 0.0
    %1726 = vmatprep.subr.mxu0 0.0
    %1727 = vmatpush2.msra.mxu0 0.0
    %1728 = vmatprep.subr.mxu0 0.0
    %1729 = vmatpush2.msra.mxu0 0.0
    %1730 = vmatprep.subr.mxu0 0.0
    %1731 = vmatpush2.msra.mxu0 0.0
    %1732 = vmatprep.subr.mxu0 0.0
    %1733 = vmatpush2.msra.mxu0 0.0
    %1734 = vmatprep.subr.mxu0 0.0
    %1735 = vmatpush2.msra.mxu0 0.0
    %1736 = vmatprep.subr.mxu0 0.0
    %1737 = vmatpush2.msra.mxu0 0.0
    %1738 = vmatprep.subr.mxu0 0.0
    %1739 = vmatpush2.msra.mxu0 0.0
    %1740 = vmatprep.subr.mxu0 0.0
    %1741 = vmatpush2.msra.mxu0 0.0
    %1742 = vmatprep.subr.mxu0 0.0
    %1743 = vmatpush2.msra.mxu0 0.0
    %1744 = vmatprep.subr.mxu0 0.0
    %1745 = vmatpush2.msra.mxu0 0.0
    %1746 = vmatprep.subr.mxu0 0.0
    %1747 = vmatpush2.msra.mxu0 0.0
    %1748 = vmatprep.subr.mxu0 0.0
    %1749 = vmatpush2.msra.mxu0 0.0
    %1750 = vmatprep.subr.mxu0 0.0
    %1751 = vmatpush2.msra.mxu0 0.0
    %1752 = vmatprep.subr.mxu0 0.0
    %1753 = vmatpush2.msra.mxu0 0.0
    %1754 = vmatprep.subr.mxu0 0.0
    %1755 = vmatpush2.msra.mxu0 0.0
    %1756 = vmatprep.mubr.f32.mxu0 0.0
    %1757 = vmatmul.mubr.f32.gmra.mxu0 %v1690
    %v1758 = vpop.f32.mrf.mxu0
    %v1759 = vadd.f32 0.0, %v1758
    %v1760 = vpop.f32.mrf.mxu0
    %1761 = vdwg.mxu0
    %1763 = vrot.lane.b32.xlu0 %v1686, 32
    %v1764 = vpop.permute.xlu0 %1763
    %v1765 = vsel %vm243, %v1764, 0
    %1767 = vmatprep.subr.mxu0 0.0
    %1768 = vmatpush1.msra.mxu0 0.0
    %1769 = vmatprep.subr.mxu0 0.0
    %1770 = vmatpush1.msra.mxu0 0.0
    %1771 = vmatprep.subr.mxu0 0.0
    %1772 = vmatpush1.msra.mxu0 0.0
    %1773 = vmatprep.subr.mxu0 0.0
    %1774 = vmatpush1.msra.mxu0 0.0
    %1775 = vmatprep.subr.mxu0 0.0
    %1776 = vmatpush1.msra.mxu0 0.0
    %1777 = vmatprep.subr.mxu0 0.0
    %1778 = vmatpush1.msra.mxu0 0.0
    %1779 = vmatprep.subr.mxu0 0.0
    %1780 = vmatpush1.msra.mxu0 0.0
    %1781 = vmatprep.subr.mxu0 0.0
    %1782 = vmatpush1.msra.mxu0 0.0
    %1783 = vmatprep.subr.mxu0 0.0
    %1784 = vmatpush1.msra.mxu0 0.0
    %1785 = vmatprep.subr.mxu0 0.0
    %1786 = vmatpush1.msra.mxu0 0.0
    %1787 = vmatprep.subr.mxu0 0.0
    %1788 = vmatpush1.msra.mxu0 0.0
    %1789 = vmatprep.subr.mxu0 0.0
    %1790 = vmatpush1.msra.mxu0 0.0
    %1791 = vmatprep.subr.mxu0 0.0
    %1792 = vmatpush1.msra.mxu0 %v231
    %1793 = vmatprep.subr.mxu0 0.0
    %1794 = vmatpush1.msra.mxu0 %v230
    %1795 = vmatprep.subr.mxu0 0.0
    %1796 = vmatpush1.msra.mxu0 %v229
    %1797 = vmatprep.subr.mxu0 0.0
    %1798 = vmatpush1.msra.mxu0 %v228
    %1799 = vmatprep.subr.mxu0 0.0
    %1800 = vmatpush2.msra.mxu0 0.0
    %1801 = vmatprep.subr.mxu0 0.0
    %1802 = vmatpush2.msra.mxu0 0.0
    %1803 = vmatprep.subr.mxu0 0.0
    %1804 = vmatpush2.msra.mxu0 0.0
    %1805 = vmatprep.subr.mxu0 0.0
    %1806 = vmatpush2.msra.mxu0 0.0
    %1807 = vmatprep.subr.mxu0 0.0
    %1808 = vmatpush2.msra.mxu0 0.0
    %1809 = vmatprep.subr.mxu0 0.0
    %1810 = vmatpush2.msra.mxu0 0.0
    %1811 = vmatprep.subr.mxu0 0.0
    %1812 = vmatpush2.msra.mxu0 0.0
    %1813 = vmatprep.subr.mxu0 0.0
    %1814 = vmatpush2.msra.mxu0 0.0
    %1815 = vmatprep.subr.mxu0 0.0
    %1816 = vmatpush2.msra.mxu0 0.0
    %1817 = vmatprep.subr.mxu0 0.0
    %1818 = vmatpush2.msra.mxu0 0.0
    %1819 = vmatprep.subr.mxu0 0.0
    %1820 = vmatpush2.msra.mxu0 0.0
    %1821 = vmatprep.subr.mxu0 0.0
    %1822 = vmatpush2.msra.mxu0 0.0
    %1823 = vmatprep.subr.mxu0 0.0
    %1824 = vmatpush2.msra.mxu0 0.0
    %1825 = vmatprep.subr.mxu0 0.0
    %1826 = vmatpush2.msra.mxu0 0.0
    %1827 = vmatprep.subr.mxu0 0.0
    %1828 = vmatpush2.msra.mxu0 0.0
    %1829 = vmatprep.subr.mxu0 0.0
    %1830 = vmatpush2.msra.mxu0 0.0
    %1831 = vmatprep.mubr.f32.mxu0 0.0
    %1832 = vmatmul.mubr.f32.gmra.mxu0 %v1765
    %v1833 = vpop.f32.mrf.mxu0
    %v1834 = vadd.f32 %v1759, %v1833
    %v1835 = vpop.f32.mrf.mxu0
    %1836 = vdwg.mxu0
    %v1837 = vadd.f32 %v1834, %v241
    %v1838 = vxor.u32 %v1837, 2147483648
    %v1839 = vmul.f32 %v1838, 1.442695
    %v1840 = vpow.pop %v1839
    %v1841 = vadd.f32 %v1840, 1.0
    %v1842 = vrcp.pop %v1841
    %v1843 = vmul.f32 1.0, %v1842
    %v1844 = vtanh.pop %v1837
    %v1845 = vmul.f32 %v1843, %v1585
    %1847 = vrot.lane.b32.xlu0 %v1844, 64
    %v1848 = vpop.permute.xlu0 %1847
    %v1850 = vmul.f32 %v1843, %v1848
    %1852 = vrot.lane.b32.xlu0 %v1850, 32
    %v1853 = vpop.permute.xlu0 %1852
    %v1855 = vadd.f32 %v1845, %v1853
    %v1856 = vtanh.pop %v1855
    %1858 = vrot.lane.b32.xlu0 %v1856, 64
    %v1859 = vpop.permute.xlu0 %1858
    %v1861 = vmul.f32 %v1843, %v1859
    %1862 = vmatprep.subr.mxu0 0.0
    %1863 = vmatpush1.msra.mxu0 0.0
    %1864 = vmatprep.subr.mxu0 0.0
    %1865 = vmatpush1.msra.mxu0 0.0
    %1866 = vmatprep.subr.mxu0 0.0
    %1867 = vmatpush1.msra.mxu0 0.0
    %1868 = vmatprep.subr.mxu0 0.0
    %1869 = vmatpush1.msra.mxu0 0.0
    %1870 = vmatprep.subr.mxu0 0.0
    %1871 = vmatpush1.msra.mxu0 0.0
    %1872 = vmatprep.subr.mxu0 0.0
    %1873 = vmatpush1.msra.mxu0 0.0
    %1874 = vmatprep.subr.mxu0 0.0
    %1875 = vmatpush1.msra.mxu0 0.0
    %1876 = vmatprep.subr.mxu0 0.0
    %1877 = vmatpush1.msra.mxu0 0.0
    %1878 = vmatprep.subr.mxu0 0.0
    %1879 = vmatpush1.msra.mxu0 0.0
    %1880 = vmatprep.subr.mxu0 0.0
    %1881 = vmatpush1.msra.mxu0 0.0
    %1882 = vmatprep.subr.mxu0 0.0
    %1883 = vmatpush1.msra.mxu0 0.0
    %1884 = vmatprep.subr.mxu0 0.0
    %1885 = vmatpush1.msra.mxu0 0.0
    %1886 = vmatprep.subr.mxu0 0.0
    %1887 = vmatpush1.msra.mxu0 %v227
    %1888 = vmatprep.subr.mxu0 0.0
    %1889 = vmatpush1.msra.mxu0 %v226
    %1890 = vmatprep.subr.mxu0 0.0
    %1891 = vmatpush1.msra.mxu0 %v225
    %1892 = vmatprep.subr.mxu0 0.0
    %1893 = vmatpush1.msra.mxu0 %v224
    %1894 = vmatprep.subr.mxu0 0.0
    %1895 = vmatpush2.msra.mxu0 0.0
    %1896 = vmatprep.subr.mxu0 0.0
    %1897 = vmatpush2.msra.mxu0 0.0
    %1898 = vmatprep.subr.mxu0 0.0
    %1899 = vmatpush2.msra.mxu0 0.0
    %1900 = vmatprep.subr.mxu0 0.0
    %1901 = vmatpush2.msra.mxu0 0.0
    %1902 = vmatprep.subr.mxu0 0.0
    %1903 = vmatpush2.msra.mxu0 0.0
    %1904 = vmatprep.subr.mxu0 0.0
    %1905 = vmatpush2.msra.mxu0 0.0
    %1906 = vmatprep.subr.mxu0 0.0
    %1907 = vmatpush2.msra.mxu0 0.0
    %1908 = vmatprep.subr.mxu0 0.0
    %1909 = vmatpush2.msra.mxu0 0.0
    %1910 = vmatprep.subr.mxu0 0.0
    %1911 = vmatpush2.msra.mxu0 0.0
    %1912 = vmatprep.subr.mxu0 0.0
    %1913 = vmatpush2.msra.mxu0 0.0
    %1914 = vmatprep.subr.mxu0 0.0
    %1915 = vmatpush2.msra.mxu0 0.0
    %1916 = vmatprep.subr.mxu0 0.0
    %1917 = vmatpush2.msra.mxu0 0.0
    %1918 = vmatprep.subr.mxu0 0.0
    %1919 = vmatpush2.msra.mxu0 0.0
    %1920 = vmatprep.subr.mxu0 0.0
    %1921 = vmatpush2.msra.mxu0 0.0
    %1922 = vmatprep.subr.mxu0 0.0
    %1923 = vmatpush2.msra.mxu0 0.0
    %1924 = vmatprep.subr.mxu0 0.0
    %1925 = vmatpush2.msra.mxu0 0.0
    %1926 = vmatprep.mubr.f32.mxu0 0.0
    %1927 = vmatmul.mubr.f32.gmra.mxu0 %v1765
    %v1928 = vpop.f32.mrf.mxu0
    %v1929 = vadd.f32 0.0, %v1928
    %v1930 = vpop.f32.mrf.mxu0
    %1931 = vdwg.mxu0
    %v1932 = vadd.f32 %v216, %v1929
    %v1933 = vxor.u32 %v1932, 2147483648
    %v1934 = vmul.f32 %v1933, 1.442695
    %v1935 = vpow.pop %v1934
    %v1936 = vadd.f32 %v1935, 1.0
    %v1937 = vrcp.pop %v1936
    %v1938 = vmul.f32 1.0, %v1937
    %v1939 = vtanh.pop %v1932
    %v1940 = vmul.f32 %v1938, %v1680
    %1942 = vrot.lane.b32.xlu0 %v1939, 64
    %v1943 = vpop.permute.xlu0 %1942
    %v1945 = vmul.f32 %v1938, %v1943
    %1947 = vrot.lane.b32.xlu0 %v1945, 32
    %v1948 = vpop.permute.xlu0 %1947
    %v1950 = vadd.f32 %v1940, %v1948
    %v1951 = vtanh.pop %v1950
    %1953 = vrot.lane.b32.xlu0 %v1951, 64
    %v1954 = vpop.permute.xlu0 %1953
    %v1956 = vmul.f32 %v1938, %v1954
    %1958 = vrot.lane.b32.xlu0 %v1861, 32
    %v1959 = vpop.permute.xlu0 %1958
    %v1960 = vsel %vm243, %v1959, 0
    %1962 = vmatprep.subr.mxu0 0.0
    %1963 = vmatpush1.msra.mxu0 0.0
    %1964 = vmatprep.subr.mxu0 0.0
    %1965 = vmatpush1.msra.mxu0 0.0
    %1966 = vmatprep.subr.mxu0 0.0
    %1967 = vmatpush1.msra.mxu0 0.0
    %1968 = vmatprep.subr.mxu0 0.0
    %1969 = vmatpush1.msra.mxu0 0.0
    %1970 = vmatprep.subr.mxu0 0.0
    %1971 = vmatpush1.msra.mxu0 0.0
    %1972 = vmatprep.subr.mxu0 0.0
    %1973 = vmatpush1.msra.mxu0 0.0
    %1974 = vmatprep.subr.mxu0 0.0
    %1975 = vmatpush1.msra.mxu0 0.0
    %1976 = vmatprep.subr.mxu0 0.0
    %1977 = vmatpush1.msra.mxu0 0.0
    %1978 = vmatprep.subr.mxu0 0.0
    %1979 = vmatpush1.msra.mxu0 0.0
    %1980 = vmatprep.subr.mxu0 0.0
    %1981 = vmatpush1.msra.mxu0 0.0
    %1982 = vmatprep.subr.mxu0 0.0
    %1983 = vmatpush1.msra.mxu0 0.0
    %1984 = vmatprep.subr.mxu0 0.0
    %1985 = vmatpush1.msra.mxu0 0.0
    %1986 = vmatprep.subr.mxu0 0.0
    %1987 = vmatpush1.msra.mxu0 %v235
    %1988 = vmatprep.subr.mxu0 0.0
    %1989 = vmatpush1.msra.mxu0 %v234
    %1990 = vmatprep.subr.mxu0 0.0
    %1991 = vmatpush1.msra.mxu0 %v233
    %1992 = vmatprep.subr.mxu0 0.0
    %1993 = vmatpush1.msra.mxu0 %v232
    %1994 = vmatprep.subr.mxu0 0.0
    %1995 = vmatpush2.msra.mxu0 0.0
    %1996 = vmatprep.subr.mxu0 0.0
    %1997 = vmatpush2.msra.mxu0 0.0
    %1998 = vmatprep.subr.mxu0 0.0
    %1999 = vmatpush2.msra.mxu0 0.0
    %2000 = vmatprep.subr.mxu0 0.0
    %2001 = vmatpush2.msra.mxu0 0.0
    %2002 = vmatprep.subr.mxu0 0.0
    %2003 = vmatpush2.msra.mxu0 0.0
    %2004 = vmatprep.subr.mxu0 0.0
    %2005 = vmatpush2.msra.mxu0 0.0
    %2006 = vmatprep.subr.mxu0 0.0
    %2007 = vmatpush2.msra.mxu0 0.0
    %2008 = vmatprep.subr.mxu0 0.0
    %2009 = vmatpush2.msra.mxu0 0.0
    %2010 = vmatprep.subr.mxu0 0.0
    %2011 = vmatpush2.msra.mxu0 0.0
    %2012 = vmatprep.subr.mxu0 0.0
    %2013 = vmatpush2.msra.mxu0 0.0
    %2014 = vmatprep.subr.mxu0 0.0
    %2015 = vmatpush2.msra.mxu0 0.0
    %2016 = vmatprep.subr.mxu0 0.0
    %2017 = vmatpush2.msra.mxu0 0.0
    %2018 = vmatprep.subr.mxu0 0.0
    %2019 = vmatpush2.msra.mxu0 0.0
    %2020 = vmatprep.subr.mxu0 0.0
    %2021 = vmatpush2.msra.mxu0 0.0
    %2022 = vmatprep.subr.mxu0 0.0
    %2023 = vmatpush2.msra.mxu0 0.0
    %2024 = vmatprep.subr.mxu0 0.0
    %2025 = vmatpush2.msra.mxu0 0.0
    %2026 = vmatprep.mubr.f32.mxu0 0.0
    %2027 = vmatmul.mubr.f32.gmra.mxu0 %v1960
    %v2028 = vpop.f32.mrf.mxu0
    %v2029 = vadd.f32 0.0, %v2028
    %v2030 = vpop.f32.mrf.mxu0
    %2031 = vdwg.mxu0
    %2033 = vrot.lane.b32.xlu0 %v1956, 32
    %v2034 = vpop.permute.xlu0 %2033
    %v2035 = vsel %vm243, %v2034, 0
    %2037 = vmatprep.subr.mxu0 0.0
    %2038 = vmatpush1.msra.mxu0 0.0
    %2039 = vmatprep.subr.mxu0 0.0
    %2040 = vmatpush1.msra.mxu0 0.0
    %2041 = vmatprep.subr.mxu0 0.0
    %2042 = vmatpush1.msra.mxu0 0.0
    %2043 = vmatprep.subr.mxu0 0.0
    %2044 = vmatpush1.msra.mxu0 0.0
    %2045 = vmatprep.subr.mxu0 0.0
    %2046 = vmatpush1.msra.mxu0 0.0
    %2047 = vmatprep.subr.mxu0 0.0
    %2048 = vmatpush1.msra.mxu0 0.0
    %2049 = vmatprep.subr.mxu0 0.0
    %2050 = vmatpush1.msra.mxu0 0.0
    %2051 = vmatprep.subr.mxu0 0.0
    %2052 = vmatpush1.msra.mxu0 0.0
    %2053 = vmatprep.subr.mxu0 0.0
    %2054 = vmatpush1.msra.mxu0 0.0
    %2055 = vmatprep.subr.mxu0 0.0
    %2056 = vmatpush1.msra.mxu0 0.0
    %2057 = vmatprep.subr.mxu0 0.0
    %2058 = vmatpush1.msra.mxu0 0.0
    %2059 = vmatprep.subr.mxu0 0.0
    %2060 = vmatpush1.msra.mxu0 0.0
    %2061 = vmatprep.subr.mxu0 0.0
    %2062 = vmatpush1.msra.mxu0 %v231
    %2063 = vmatprep.subr.mxu0 0.0
    %2064 = vmatpush1.msra.mxu0 %v230
    %2065 = vmatprep.subr.mxu0 0.0
    %2066 = vmatpush1.msra.mxu0 %v229
    %2067 = vmatprep.subr.mxu0 0.0
    %2068 = vmatpush1.msra.mxu0 %v228
    %2069 = vmatprep.subr.mxu0 0.0
    %2070 = vmatpush2.msra.mxu0 0.0
    %2071 = vmatprep.subr.mxu0 0.0
    %2072 = vmatpush2.msra.mxu0 0.0
    %2073 = vmatprep.subr.mxu0 0.0
    %2074 = vmatpush2.msra.mxu0 0.0
    %2075 = vmatprep.subr.mxu0 0.0
    %2076 = vmatpush2.msra.mxu0 0.0
    %2077 = vmatprep.subr.mxu0 0.0
    %2078 = vmatpush2.msra.mxu0 0.0
    %2079 = vmatprep.subr.mxu0 0.0
    %2080 = vmatpush2.msra.mxu0 0.0
    %2081 = vmatprep.subr.mxu0 0.0
    %2082 = vmatpush2.msra.mxu0 0.0
    %2083 = vmatprep.subr.mxu0 0.0
    %2084 = vmatpush2.msra.mxu0 0.0
    %2085 = vmatprep.subr.mxu0 0.0
    %2086 = vmatpush2.msra.mxu0 0.0
    %2087 = vmatprep.subr.mxu0 0.0
    %2088 = vmatpush2.msra.mxu0 0.0
    %2089 = vmatprep.subr.mxu0 0.0
    %2090 = vmatpush2.msra.mxu0 0.0
    %2091 = vmatprep.subr.mxu0 0.0
    %2092 = vmatpush2.msra.mxu0 0.0
    %2093 = vmatprep.subr.mxu0 0.0
    %2094 = vmatpush2.msra.mxu0 0.0
    %2095 = vmatprep.subr.mxu0 0.0
    %2096 = vmatpush2.msra.mxu0 0.0
    %2097 = vmatprep.subr.mxu0 0.0
    %2098 = vmatpush2.msra.mxu0 0.0
    %2099 = vmatprep.subr.mxu0 0.0
    %2100 = vmatpush2.msra.mxu0 0.0
    %2101 = vmatprep.mubr.f32.mxu0 0.0
    %2102 = vmatmul.mubr.f32.gmra.mxu0 %v2035
    %v2103 = vpop.f32.mrf.mxu0
    %v2104 = vadd.f32 %v2029, %v2103
    %v2105 = vpop.f32.mrf.mxu0
    %2106 = vdwg.mxu0
    %v2107 = vadd.f32 %v2104, %v241
    %v2108 = vxor.u32 %v2107, 2147483648
    %v2109 = vmul.f32 %v2108, 1.442695
    %v2110 = vpow.pop %v2109
    %v2111 = vadd.f32 %v2110, 1.0
    %v2112 = vrcp.pop %v2111
    %v2113 = vmul.f32 1.0, %v2112
    %v2114 = vtanh.pop %v2107
    %v2115 = vmul.f32 %v2113, %v1855
    %2117 = vrot.lane.b32.xlu0 %v2114, 64
    %v2118 = vpop.permute.xlu0 %2117
    %v2120 = vmul.f32 %v2113, %v2118
    %2122 = vrot.lane.b32.xlu0 %v2120, 32
    %v2123 = vpop.permute.xlu0 %2122
    %v2125 = vadd.f32 %v2115, %v2123
    %v2126 = vtanh.pop %v2125
    %2128 = vrot.lane.b32.xlu0 %v2126, 64
    %v2129 = vpop.permute.xlu0 %2128
    %v2131 = vmul.f32 %v2113, %v2129
    %2132 = vmatprep.subr.mxu0 0.0
    %2133 = vmatpush1.msra.mxu0 0.0
    %2134 = vmatprep.subr.mxu0 0.0
    %2135 = vmatpush1.msra.mxu0 0.0
    %2136 = vmatprep.subr.mxu0 0.0
    %2137 = vmatpush1.msra.mxu0 0.0
    %2138 = vmatprep.subr.mxu0 0.0
    %2139 = vmatpush1.msra.mxu0 0.0
    %2140 = vmatprep.subr.mxu0 0.0
    %2141 = vmatpush1.msra.mxu0 0.0
    %2142 = vmatprep.subr.mxu0 0.0
    %2143 = vmatpush1.msra.mxu0 0.0
    %2144 = vmatprep.subr.mxu0 0.0
    %2145 = vmatpush1.msra.mxu0 0.0
    %2146 = vmatprep.subr.mxu0 0.0
    %2147 = vmatpush1.msra.mxu0 0.0
    %2148 = vmatprep.subr.mxu0 0.0
    %2149 = vmatpush1.msra.mxu0 0.0
    %2150 = vmatprep.subr.mxu0 0.0
    %2151 = vmatpush1.msra.mxu0 0.0
    %2152 = vmatprep.subr.mxu0 0.0
    %2153 = vmatpush1.msra.mxu0 0.0
    %2154 = vmatprep.subr.mxu0 0.0
    %2155 = vmatpush1.msra.mxu0 0.0
    %2156 = vmatprep.subr.mxu0 0.0
    %2157 = vmatpush1.msra.mxu0 %v227
    %2158 = vmatprep.subr.mxu0 0.0
    %2159 = vmatpush1.msra.mxu0 %v226
    %2160 = vmatprep.subr.mxu0 0.0
    %2161 = vmatpush1.msra.mxu0 %v225
    %2162 = vmatprep.subr.mxu0 0.0
    %2163 = vmatpush1.msra.mxu0 %v224
    %2164 = vmatprep.subr.mxu0 0.0
    %2165 = vmatpush2.msra.mxu0 0.0
    %2166 = vmatprep.subr.mxu0 0.0
    %2167 = vmatpush2.msra.mxu0 0.0
    %2168 = vmatprep.subr.mxu0 0.0
    %2169 = vmatpush2.msra.mxu0 0.0
    %2170 = vmatprep.subr.mxu0 0.0
    %2171 = vmatpush2.msra.mxu0 0.0
    %2172 = vmatprep.subr.mxu0 0.0
    %2173 = vmatpush2.msra.mxu0 0.0
    %2174 = vmatprep.subr.mxu0 0.0
    %2175 = vmatpush2.msra.mxu0 0.0
    %2176 = vmatprep.subr.mxu0 0.0
    %2177 = vmatpush2.msra.mxu0 0.0
    %2178 = vmatprep.subr.mxu0 0.0
    %2179 = vmatpush2.msra.mxu0 0.0
    %2180 = vmatprep.subr.mxu0 0.0
    %2181 = vmatpush2.msra.mxu0 0.0
    %2182 = vmatprep.subr.mxu0 0.0
    %2183 = vmatpush2.msra.mxu0 0.0
    %2184 = vmatprep.subr.mxu0 0.0
    %2185 = vmatpush2.msra.mxu0 0.0
    %2186 = vmatprep.subr.mxu0 0.0
    %2187 = vmatpush2.msra.mxu0 0.0
    %2188 = vmatprep.subr.mxu0 0.0
    %2189 = vmatpush2.msra.mxu0 0.0
    %2190 = vmatprep.subr.mxu0 0.0
    %2191 = vmatpush2.msra.mxu0 0.0
    %2192 = vmatprep.subr.mxu0 0.0
    %2193 = vmatpush2.msra.mxu0 0.0
    %2194 = vmatprep.subr.mxu0 0.0
    %2195 = vmatpush2.msra.mxu0 0.0
    %2196 = vmatprep.mubr.f32.mxu0 0.0
    %2197 = vmatmul.mubr.f32.gmra.mxu0 %v2035
    %v2198 = vpop.f32.mrf.mxu0
    %v2199 = vadd.f32 0.0, %v2198
    %v2200 = vpop.f32.mrf.mxu0
    %2201 = vdwg.mxu0
    %v2202 = vadd.f32 %v221, %v2199
    %v2203 = vxor.u32 %v2202, 2147483648
    %v2204 = vmul.f32 %v2203, 1.442695
    %v2205 = vpow.pop %v2204
    %v2206 = vadd.f32 %v2205, 1.0
    %v2207 = vrcp.pop %v2206
    %v2208 = vmul.f32 1.0, %v2207
    %v2209 = vtanh.pop %v2202
    %v2210 = vmul.f32 %v2208, %v1950
    %2212 = vrot.lane.b32.xlu0 %v2209, 64
    %v2213 = vpop.permute.xlu0 %2212
    %v2215 = vmul.f32 %v2208, %v2213
    %2217 = vrot.lane.b32.xlu0 %v2215, 32
    %v2218 = vpop.permute.xlu0 %2217
    %v2220 = vadd.f32 %v2210, %v2218
    %v2221 = vtanh.pop %v2220
    %2223 = vrot.lane.b32.xlu0 %v2221, 64
    %v2224 = vpop.permute.xlu0 %2223
    %v2226 = vmul.f32 %v2208, %v2224
    %2228 = vrot.lane.b32.xlu0 %v2131, 32
    %v2229 = vpop.permute.xlu0 %2228
    %v2230 = vsel %vm243, %v2229, 0
    %2232 = vmatprep.subr.mxu0 0.0
    %2233 = vmatpush1.msra.mxu0 0.0
    %2234 = vmatprep.subr.mxu0 0.0
    %2235 = vmatpush1.msra.mxu0 0.0
    %2236 = vmatprep.subr.mxu0 0.0
    %2237 = vmatpush1.msra.mxu0 0.0
    %2238 = vmatprep.subr.mxu0 0.0
    %2239 = vmatpush1.msra.mxu0 0.0
    %2240 = vmatprep.subr.mxu0 0.0
    %2241 = vmatpush1.msra.mxu0 0.0
    %2242 = vmatprep.subr.mxu0 0.0
    %2243 = vmatpush1.msra.mxu0 0.0
    %2244 = vmatprep.subr.mxu0 0.0
    %2245 = vmatpush1.msra.mxu0 0.0
    %2246 = vmatprep.subr.mxu0 0.0
    %2247 = vmatpush1.msra.mxu0 0.0
    %2248 = vmatprep.subr.mxu0 0.0
    %2249 = vmatpush1.msra.mxu0 0.0
    %2250 = vmatprep.subr.mxu0 0.0
    %2251 = vmatpush1.msra.mxu0 0.0
    %2252 = vmatprep.subr.mxu0 0.0
    %2253 = vmatpush1.msra.mxu0 0.0
    %2254 = vmatprep.subr.mxu0 0.0
    %2255 = vmatpush1.msra.mxu0 0.0
    %2256 = vmatprep.subr.mxu0 0.0
    %2257 = vmatpush1.msra.mxu0 %v235
    %2258 = vmatprep.subr.mxu0 0.0
    %2259 = vmatpush1.msra.mxu0 %v234
    %2260 = vmatprep.subr.mxu0 0.0
    %2261 = vmatpush1.msra.mxu0 %v233
    %2262 = vmatprep.subr.mxu0 0.0
    %2263 = vmatpush1.msra.mxu0 %v232
    %2264 = vmatprep.subr.mxu0 0.0
    %2265 = vmatpush2.msra.mxu0 0.0
    %2266 = vmatprep.subr.mxu0 0.0
    %2267 = vmatpush2.msra.mxu0 0.0
    %2268 = vmatprep.subr.mxu0 0.0
    %2269 = vmatpush2.msra.mxu0 0.0
    %2270 = vmatprep.subr.mxu0 0.0
    %2271 = vmatpush2.msra.mxu0 0.0
    %2272 = vmatprep.subr.mxu0 0.0
    %2273 = vmatpush2.msra.mxu0 0.0
    %2274 = vmatprep.subr.mxu0 0.0
    %2275 = vmatpush2.msra.mxu0 0.0
    %2276 = vmatprep.subr.mxu0 0.0
    %2277 = vmatpush2.msra.mxu0 0.0
    %2278 = vmatprep.subr.mxu0 0.0
    %2279 = vmatpush2.msra.mxu0 0.0
    %2280 = vmatprep.subr.mxu0 0.0
    %2281 = vmatpush2.msra.mxu0 0.0
    %2282 = vmatprep.subr.mxu0 0.0
    %2283 = vmatpush2.msra.mxu0 0.0
    %2284 = vmatprep.subr.mxu0 0.0
    %2285 = vmatpush2.msra.mxu0 0.0
    %2286 = vmatprep.subr.mxu0 0.0
    %2287 = vmatpush2.msra.mxu0 0.0
    %2288 = vmatprep.subr.mxu0 0.0
    %2289 = vmatpush2.msra.mxu0 0.0
    %2290 = vmatprep.subr.mxu0 0.0
    %2291 = vmatpush2.msra.mxu0 0.0
    %2292 = vmatprep.subr.mxu0 0.0
    %2293 = vmatpush2.msra.mxu0 0.0
    %2294 = vmatprep.subr.mxu0 0.0
    %2295 = vmatpush2.msra.mxu0 0.0
    %2296 = vmatprep.mubr.f32.mxu0 0.0
    %2297 = vmatmul.mubr.f32.gmra.mxu0 %v2230
    %v2298 = vpop.f32.mrf.mxu0
    %v2299 = vadd.f32 0.0, %v2298
    %v2300 = vpop.f32.mrf.mxu0
    %2301 = vdwg.mxu0
    %2303 = vrot.lane.b32.xlu0 %v2226, 32
    %v2304 = vpop.permute.xlu0 %2303
    %v2305 = vsel %vm243, %v2304, 0
    %2307 = vmatprep.subr.mxu0 0.0
    %2308 = vmatpush1.msra.mxu0 0.0
    %2309 = vmatprep.subr.mxu0 0.0
    %2310 = vmatpush1.msra.mxu0 0.0
    %2311 = vmatprep.subr.mxu0 0.0
    %2312 = vmatpush1.msra.mxu0 0.0
    %2313 = vmatprep.subr.mxu0 0.0
    %2314 = vmatpush1.msra.mxu0 0.0
    %2315 = vmatprep.subr.mxu0 0.0
    %2316 = vmatpush1.msra.mxu0 0.0
    %2317 = vmatprep.subr.mxu0 0.0
    %2318 = vmatpush1.msra.mxu0 0.0
    %2319 = vmatprep.subr.mxu0 0.0
    %2320 = vmatpush1.msra.mxu0 0.0
    %2321 = vmatprep.subr.mxu0 0.0
    %2322 = vmatpush1.msra.mxu0 0.0
    %2323 = vmatprep.subr.mxu0 0.0
    %2324 = vmatpush1.msra.mxu0 0.0
    %2325 = vmatprep.subr.mxu0 0.0
    %2326 = vmatpush1.msra.mxu0 0.0
    %2327 = vmatprep.subr.mxu0 0.0
    %2328 = vmatpush1.msra.mxu0 0.0
    %2329 = vmatprep.subr.mxu0 0.0
    %2330 = vmatpush1.msra.mxu0 0.0
    %2331 = vmatprep.subr.mxu0 0.0
    %2332 = vmatpush1.msra.mxu0 %v231
    %2333 = vmatprep.subr.mxu0 0.0
    %2334 = vmatpush1.msra.mxu0 %v230
    %2335 = vmatprep.subr.mxu0 0.0
    %2336 = vmatpush1.msra.mxu0 %v229
    %2337 = vmatprep.subr.mxu0 0.0
    %2338 = vmatpush1.msra.mxu0 %v228
    %2339 = vmatprep.subr.mxu0 0.0
    %2340 = vmatpush2.msra.mxu0 0.0
    %2341 = vmatprep.subr.mxu0 0.0
    %2342 = vmatpush2.msra.mxu0 0.0
    %2343 = vmatprep.subr.mxu0 0.0
    %2344 = vmatpush2.msra.mxu0 0.0
    %2345 = vmatprep.subr.mxu0 0.0
    %2346 = vmatpush2.msra.mxu0 0.0
    %2347 = vmatprep.subr.mxu0 0.0
    %2348 = vmatpush2.msra.mxu0 0.0
    %2349 = vmatprep.subr.mxu0 0.0
    %2350 = vmatpush2.msra.mxu0 0.0
    %2351 = vmatprep.subr.mxu0 0.0
    %2352 = vmatpush2.msra.mxu0 0.0
    %2353 = vmatprep.subr.mxu0 0.0
    %2354 = vmatpush2.msra.mxu0 0.0
    %2355 = vmatprep.subr.mxu0 0.0
    %2356 = vmatpush2.msra.mxu0 0.0
    %2357 = vmatprep.subr.mxu0 0.0
    %2358 = vmatpush2.msra.mxu0 0.0
    %2359 = vmatprep.subr.mxu0 0.0
    %2360 = vmatpush2.msra.mxu0 0.0
    %2361 = vmatprep.subr.mxu0 0.0
    %2362 = vmatpush2.msra.mxu0 0.0
    %2363 = vmatprep.subr.mxu0 0.0
    %2364 = vmatpush2.msra.mxu0 0.0
    %2365 = vmatprep.subr.mxu0 0.0
    %2366 = vmatpush2.msra.mxu0 0.0
    %2367 = vmatprep.subr.mxu0 0.0
    %2368 = vmatpush2.msra.mxu0 0.0
    %2369 = vmatprep.subr.mxu0 0.0
    %2370 = vmatpush2.msra.mxu0 0.0
    %2371 = vmatprep.mubr.f32.mxu0 0.0
    %2372 = vmatmul.mubr.f32.gmra.mxu0 %v2305
    %v2373 = vpop.f32.mrf.mxu0
    %v2374 = vadd.f32 %v2299, %v2373
    %v2375 = vpop.f32.mrf.mxu0
    %2376 = vdwg.mxu0
    %v2377 = vadd.f32 %v2374, %v241
    %v2378 = vxor.u32 %v2377, 2147483648
    %v2379 = vmul.f32 %v2378, 1.442695
    %v2380 = vpow.pop %v2379
    %v2381 = vadd.f32 %v2380, 1.0
    %v2382 = vrcp.pop %v2381
    %v2383 = vmul.f32 1.0, %v2382
    %v2384 = vtanh.pop %v2377
    %v2385 = vmul.f32 %v2383, %v2125
    %2387 = vrot.lane.b32.xlu0 %v2384, 64
    %v2388 = vpop.permute.xlu0 %2387
    %v2390 = vmul.f32 %v2383, %v2388
    %2392 = vrot.lane.b32.xlu0 %v2390, 32
    %v2393 = vpop.permute.xlu0 %2392
    %v2395 = vadd.f32 %v2385, %v2393
    %v2396 = vtanh.pop %v2395
    %2398 = vrot.lane.b32.xlu0 %v2396, 64
    %v2399 = vpop.permute.xlu0 %2398
    %v2401 = vmul.f32 %v2383, %v2399
    %v2402 = vld [vmem:[%s7] sm:$0xff]
    %v2403 = vld [vmem:[%s7 + $0x8] sm:$0xff]
    %v2404 = vld [vmem:[%s7 + $0x10] sm:$0xff]
    %v2405 = vld [vmem:[%s7 + $0x18] sm:$0xff]
    %v2406 = vld [vmem:[%s8] sm:$0x1]
    %v2408 = vlaneseq
    %v2409 = vshrl.u32 %v2408, 7
    %v2410 = vsub.s32 0, %v2409
    %v2411 = vrot.slane %v2406, %v2410
    %2414 = vrot.lane.b32.xlu0 %v2401, 32
    %v2415 = vpop.permute.xlu0 %2414
    %v2416 = vsel %vm243, %v2415, 0
    %2418 = vmatprep.subr.mxu0 0.0
    %2419 = vmatpush1.msra.mxu0 0.0
    %2420 = vmatprep.subr.mxu0 0.0
    %2421 = vmatpush1.msra.mxu0 0.0
    %2422 = vmatprep.subr.mxu0 0.0
    %2423 = vmatpush1.msra.mxu0 0.0
    %2424 = vmatprep.subr.mxu0 0.0
    %2425 = vmatpush1.msra.mxu0 0.0
    %2426 = vmatprep.subr.mxu0 0.0
    %2427 = vmatpush1.msra.mxu0 0.0
    %2428 = vmatprep.subr.mxu0 0.0
    %2429 = vmatpush1.msra.mxu0 0.0
    %2430 = vmatprep.subr.mxu0 0.0
    %2431 = vmatpush1.msra.mxu0 0.0
    %2432 = vmatprep.subr.mxu0 0.0
    %2433 = vmatpush1.msra.mxu0 0.0
    %2434 = vmatprep.subr.mxu0 0.0
    %2435 = vmatpush1.msra.mxu0 0.0
    %2436 = vmatprep.subr.mxu0 0.0
    %2437 = vmatpush1.msra.mxu0 0.0
    %2438 = vmatprep.subr.mxu0 0.0
    %2439 = vmatpush1.msra.mxu0 0.0
    %2440 = vmatprep.subr.mxu0 0.0
    %2441 = vmatpush1.msra.mxu0 0.0
    %2442 = vmatprep.subr.mxu0 0.0
    %2443 = vmatpush1.msra.mxu0 %v2405
    %2444 = vmatprep.subr.mxu0 0.0
    %2445 = vmatpush1.msra.mxu0 %v2404
    %2446 = vmatprep.subr.mxu0 0.0
    %2447 = vmatpush1.msra.mxu0 %v2403
    %2448 = vmatprep.subr.mxu0 0.0
    %2449 = vmatpush1.msra.mxu0 %v2402
    %2450 = vmatprep.subr.mxu0 0.0
    %2451 = vmatpush2.msra.mxu0 0.0
    %2452 = vmatprep.subr.mxu0 0.0
    %2453 = vmatpush2.msra.mxu0 0.0
    %2454 = vmatprep.subr.mxu0 0.0
    %2455 = vmatpush2.msra.mxu0 0.0
    %2456 = vmatprep.subr.mxu0 0.0
    %2457 = vmatpush2.msra.mxu0 0.0
    %2458 = vmatprep.subr.mxu0 0.0
    %2459 = vmatpush2.msra.mxu0 0.0
    %2460 = vmatprep.subr.mxu0 0.0
    %2461 = vmatpush2.msra.mxu0 0.0
    %2462 = vmatprep.subr.mxu0 0.0
    %2463 = vmatpush2.msra.mxu0 0.0
    %2464 = vmatprep.subr.mxu0 0.0
    %2465 = vmatpush2.msra.mxu0 0.0
    %2466 = vmatprep.subr.mxu0 0.0
    %2467 = vmatpush2.msra.mxu0 0.0
    %2468 = vmatprep.subr.mxu0 0.0
    %2469 = vmatpush2.msra.mxu0 0.0
    %2470 = vmatprep.subr.mxu0 0.0
    %2471 = vmatpush2.msra.mxu0 0.0
    %2472 = vmatprep.subr.mxu0 0.0
    %2473 = vmatpush2.msra.mxu0 0.0
    %2474 = vmatprep.subr.mxu0 0.0
    %2475 = vmatpush2.msra.mxu0 0.0
    %2476 = vmatprep.subr.mxu0 0.0
    %2477 = vmatpush2.msra.mxu0 0.0
    %2478 = vmatprep.subr.mxu0 0.0
    %2479 = vmatpush2.msra.mxu0 0.0
    %2480 = vmatprep.subr.mxu0 0.0
    %2481 = vmatpush2.msra.mxu0 0.0
    %2482 = vmatprep.mubr.f32.mxu0 0.0
    %2483 = vmatmul.mubr.f32.gmra.mxu0 %v2416
    %v2484 = vpop.f32.mrf.mxu0
    %v2485 = vadd.f32 %v2411, %v2484
    %v2486 = vpop.f32.mrf.mxu0
    %2487 = vdwg.mxu0
    %vm2488 = vcmask 39936
    %2489 = vst.msk [vmem:[#allocation10] sm:$0xff] %vm2488, %v2485
    // Predicated region
    $region54: #{tpu_custom_call.1} parent=1 // pred_check
      _
    $region55: #{tpu_custom_call.1} parent=1 // pred_check_branch
      %2491 = sbr.rel (0) target = $region57
    $region56: #{tpu_custom_call.1} parent=1 // pred_region
      %s2493 = ssub.s32 128, 128
      %2494 = vsyncadd [#allocation4], %s2493
      %s2496 = sshll.u32 [#allocation10], 4
      %s2497 = int_to_ptr.vmem [resolvable:$true] %s2496
      %2499 = dma.vmem_to_hbm [thread:$0]  %s2497, 128, %s9, [#allocation4]
    $region57: #{tpu_custom_call.1} parent=1 // pred_fallthru
      _
    // Predicated region
    $region58: #{tpu_custom_call.1} parent=1 // pred_check
      _
    $region59: #{tpu_custom_call.1} parent=1 // pred_check_branch
      %2501 = sbr.rel (0) target = $region61
    $region60: #{tpu_custom_call.1} parent=1 // pred_region
      %2502 = dma.done [#allocation4], 128
    $region61: #{tpu_custom_call.1} parent=1 // pred_fallthru
      _
    %2503 = vsyncpa [#allocation3], 1
    %2504 = vsyncpa [#allocation6], 1
    %2505 = vsyncpa [#allocation9], 1
    %2506 = vsyncpa [#allocation4], 1

</llo_original>
